<compile_context>
chip_gen: v5e
topology: v5e:2x2
jax: 0.10.0
libtpu: 0.0.40
codegen_flags: <defaults>
</compile_context>

<pallas_src>
import math
import jax
import jax.numpy as jnp
from jax.experimental import pallas as pl
from jax.experimental.pallas import tpu as pltpu

# ----------------------------- config ---------------------------------------
DIM_MODEL = 32          # args.dim_model
NUM_HEADS = 4           # args.num_head_flow
D_K = DIM_MODEL // NUM_HEADS
D_FF = 64               # args.d_ff
NUM_LAYERS = 2          # args.num_encoder_flow
NUM_PKT = 8             # args.num_pkt (sequence length)
MAX_LEN = 16            # args.sentence_max_len
NUM_CLASSES = 5         # args.num_classes
PAD_CLASSES = 128       # lane-dense logits store; wrapper slices [:, :NUM_CLASSES]
LANES = 128             # slab lane width
LN_EPS = 1e-6

assert NUM_PKT == (1 << (NUM_PKT.bit_length() - 1)), "NUM_PKT must be a power of 2"
_PKT_SHIFT = NUM_PKT.bit_length() - 1


# ----------------------- packed-parameter slab layout ------------------------
def _build_layout():
    """Row offsets (8-aligned) of every tensor inside the (ROWS, 128) slab."""
    offs = {}
    off = 0

    def alloc(name, rows):
        nonlocal off
        offs[name] = off
        off += -(-rows // 8) * 8          # round rows up to a sublane tile

    alloc("pe", NUM_PKT)                  # (S, D)      lanes 0:D
    for l in range(NUM_LAYERS):
        alloc(f"ln{l}", 4)                # rows: 0=g_attn 1=b_attn 2=g_ff 3=b_ff
        alloc(f"wqkv{l}", 3 * DIM_MODEL)  # Wq|Wk|Wv stacked along rows, lanes 0:D
        alloc(f"bqkv{l}", 3)              # bq,bk,bv rows, lanes 0:D
        alloc(f"wo{l}", DIM_MODEL)        # (D, D)
        alloc(f"bo{l}", 1)
        alloc(f"w1{l}", DIM_MODEL)        # (D, D_FF)   lanes 0:D_FF
        alloc(f"b1{l}", 1)
        alloc(f"w2{l}", D_FF)             # (D_FF, D)
        alloc(f"b2{l}", 1)
    alloc("hln", 2)                       # final LN gain(0)/bias(1)
    alloc("hw", NUM_PKT * DIM_MODEL)      # folded fc1@fc2_pad: (S*D, 128)
    alloc("hb", 1)                        # folded head bias:   (1, 128)
    return offs, off


OFFS, SLAB_ROWS = _build_layout()         # 808 rows x 128 lanes x f32 ~= 404 KB


# ----------------------------- wrapper + kernel ------------------------------
def transformer_flow_forward(x, slab):
    B, S, D = x.shape
    assert S == NUM_PKT and D == DIM_MODEL
    batch = B
    bs = B * S
    inv_sqrt_dk = 1.0 / math.sqrt(D_K)

    def kernel(x_ref, p_ref, out_ref, xn_scr):
        def row(name, r, width=DIM_MODEL):
            base = OFFS[name] + r
            return p_ref[base:base + 1, 0:width]

        def layer_norm(v, g, b):
            # torch: a*(v-mean)/(std+eps)+b with unbiased (n-1) std; exact divide.
            mean = jnp.mean(v, axis=-1, keepdims=True)
            c = v - mean
            var = jnp.sum(c * c, axis=-1, keepdims=True) * (1.0 / (DIM_MODEL - 1))
            return g * c / (jnp.sqrt(var) + LN_EPS) + b

        # --- masks built from iota (trace-time shapes, no extra DMAs) ---
        lane = jax.lax.broadcasted_iota(jnp.int32, (1, DIM_MODEL), 1)
        head_masks = [
            jnp.where((lane >= h * D_K) & (lane < (h + 1) * D_K), 1.0, 0.0)
            for h in range(NUM_HEADS)]
        ri = jax.lax.broadcasted_iota(jnp.int32, (bs, bs), 0)
        ci = jax.lax.broadcasted_iota(jnp.int32, (bs, bs), 1)
        amask = jnp.where(jnp.right_shift(ri, _PKT_SHIFT) ==
                          jnp.right_shift(ci, _PKT_SHIFT), 0.0, -1e30)

        # --- positional encoding: (S, D) from the slab, sublane-tiled over batch ---
        pe = p_ref[OFFS["pe"]:OFFS["pe"] + NUM_PKT, 0:DIM_MODEL]
        x = x_ref[...] + jnp.concatenate([pe] * batch, axis=0)     # dropout = id

        for l in range(NUM_LAYERS):                                 # static unroll
            # ---- sublayer 0: pre-norm multi-head self-attention + residual ----
            xn = layer_norm(x, row(f"ln{l}", 0), row(f"ln{l}", 1))
            woff = OFFS[f"wqkv{l}"]
            q = jnp.dot(xn, p_ref[woff:woff + DIM_MODEL, 0:DIM_MODEL],
                        preferred_element_type=jnp.float32) + row(f"bqkv{l}", 0)
            k = jnp.dot(xn, p_ref[woff + DIM_MODEL:woff + 2 * DIM_MODEL, 0:DIM_MODEL],
                        preferred_element_type=jnp.float32) + row(f"bqkv{l}", 1)
            v = jnp.dot(xn, p_ref[woff + 2 * DIM_MODEL:woff + 3 * DIM_MODEL, 0:DIM_MODEL],
                        preferred_element_type=jnp.float32) + row(f"bqkv{l}", 2)

            o = jnp.zeros((bs, DIM_MODEL), jnp.float32)
            for h in range(NUM_HEADS):
                kh = k * head_masks[h]                               # zero non-head lanes
                s = jax.lax.dot_general(q, kh, (((1,), (1,)), ((), ())),
                                        preferred_element_type=jnp.float32)
                s = s * inv_sqrt_dk + amask                          # kill cross-batch keys
                s = s - jnp.max(s, axis=-1, keepdims=True)
                p = jnp.exp(s)
                p = p * pl.reciprocal(jnp.sum(p, axis=-1, keepdims=True), approx=True)
                o = o + jnp.dot(p, v * head_masks[h],
                                preferred_element_type=jnp.float32)  # head lanes only

            wo_off = OFFS[f"wo{l}"]
            attn = jnp.dot(o, p_ref[wo_off:wo_off + DIM_MODEL, 0:DIM_MODEL],
                           preferred_element_type=jnp.float32) + row(f"bo{l}", 0)
            x = x + attn                                             # residual

            # ---- sublayer 1: pre-norm one_dim_cnn (1x1 convs == FFN) + residual ----
            hn = layer_norm(x, row(f"ln{l}", 2), row(f"ln{l}", 3))
            w1 = p_ref[OFFS[f"w1{l}"]:OFFS[f"w1{l}"] + DIM_MODEL, 0:D_FF]
            fb1 = row(f"b1{l}", 0, width=D_FF)
            w2 = p_ref[OFFS[f"w2{l}"]:OFFS[f"w2{l}"] + D_FF, 0:DIM_MODEL]
            fb2 = row(f"b2{l}", 0)
            ff = jnp.maximum(jnp.dot(hn, w1, preferred_element_type=jnp.float32) + fb1, 0.0)
            ff = jnp.dot(ff, w2, preferred_element_type=jnp.float32) + fb2
            x = x + ff                                               # residual

        # ---- head: final LN -> (flatten -> fc1 -> fc2) as one accumulated matmul ----
        xn = layer_norm(x, row("hln", 0), row("hln", 1))
        xn_scr[...] = xn
        logits = (jnp.zeros((batch, PAD_CLASSES), jnp.float32)
                  + p_ref[OFFS["hb"]:OFFS["hb"] + 1, :])             # folded bias
        for sp in range(NUM_PKT):
            rows = xn_scr[pl.ds(sp, batch, stride=NUM_PKT), :]       # (B, D) strided rows
            w_s = p_ref[OFFS["hw"] + sp * DIM_MODEL:
                        OFFS["hw"] + (sp + 1) * DIM_MODEL, :]        # (D, 128)
            logits = logits + jnp.dot(rows, w_s, preferred_element_type=jnp.float32)
        out_ref[...] = logits                                        # (B, 128) lane-dense

    padded_logits = pl.pallas_call(
        kernel,
        out_shape=jax.ShapeDtypeStruct((B, PAD_CLASSES), jnp.float32),
        scratch_shapes=[pltpu.VMEM((bs, DIM_MODEL), jnp.float32)],
    )(x.reshape(bs, DIM_MODEL), slab)

    logits = padded_logits[:, :NUM_CLASSES]                          # (B, C)
    # eval-mode return: F.softmax(out, -1).max(1)[1] == argmax over classes
    preds = jnp.argmax(logits, axis=-1)
    return logits, preds


# ----------------------------- params ----------------------------------------
def positional_encoding(max_len, d_model):
    pos = jnp.arange(max_len, dtype=jnp.float32)[:, None]
    div = jnp.exp(jnp.arange(0, d_model, 2, dtype=jnp.float32)
                  * (-math.log(10000.0) / d_model))
    pe = jnp.zeros((max_len, d_model), jnp.float32)
    pe = pe.at[:, 0::2].set(jnp.sin(pos * div))
    pe = pe.at[:, 1::2].set(jnp.cos(pos * div))
    return pe


def _linear(key, fan_in, fan_out):
    kw, kb = jax.random.split(key)
    bound = 1.0 / math.sqrt(fan_in)
    w = jax.random.uniform(kw, (fan_in, fan_out), jnp.float32, -bound, bound)
    b = jax.random.uniform(kb, (fan_out,), jnp.float32, -bound, bound)
    return w, b


def init_params(key):
    """Build the single lane-dense (SLAB_ROWS, 128) parameter slab."""
    keys = jax.random.split(key, NUM_LAYERS * 6 + 2)
    ki = 0
    slab = jnp.zeros((SLAB_ROWS, LANES), jnp.float32)

    def put(slab, name, arr, r=0):
        arr = jnp.asarray(arr, jnp.float32)
        nr, nc = arr.shape
        return slab.at[OFFS[name] + r: OFFS[name] + r + nr, :nc].set(arr)

    slab = put(slab, "pe", positional_encoding(MAX_LEN, DIM_MODEL)[:NUM_PKT])

    for l in range(NUM_LAYERS):
        wq, bq = _linear(keys[ki], DIM_MODEL, DIM_MODEL); ki += 1
        wk, bk = _linear(keys[ki], DIM_MODEL, DIM_MODEL); ki += 1
        wv, bv = _linear(keys[ki], DIM_MODEL, DIM_MODEL); ki += 1
        wo, bo = _linear(keys[ki], DIM_MODEL, DIM_MODEL); ki += 1
        w1, b1 = _linear(keys[ki], DIM_MODEL, D_FF); ki += 1
        w2, b2 = _linear(keys[ki], D_FF, DIM_MODEL); ki += 1
        # two independent LayerNorms per encoder layer (sublayer 0=attn, 1=conv)
        slab = put(slab, f"ln{l}", jnp.ones((1, DIM_MODEL)), 0)
        slab = put(slab, f"ln{l}", jnp.zeros((1, DIM_MODEL)), 1)
        slab = put(slab, f"ln{l}", jnp.ones((1, DIM_MODEL)), 2)
        slab = put(slab, f"ln{l}", jnp.zeros((1, DIM_MODEL)), 3)
        slab = put(slab, f"wqkv{l}", jnp.concatenate([wq, wk, wv], axis=0))  # (3D, D)
        slab = put(slab, f"bqkv{l}", jnp.stack([bq, bk, bv], axis=0))        # (3, D)
        slab = put(slab, f"wo{l}", wo)
        slab = put(slab, f"bo{l}", bo[None, :])
        slab = put(slab, f"w1{l}", w1)
        slab = put(slab, f"b1{l}", b1[None, :])
        slab = put(slab, f"w2{l}", w2)
        slab = put(slab, f"b2{l}", b2[None, :])

    slab = put(slab, "hln", jnp.ones((1, DIM_MODEL)), 0)
    slab = put(slab, "hln", jnp.zeros((1, DIM_MODEL)), 1)

    fw1, fb1 = _linear(keys[ki], NUM_PKT * DIM_MODEL, DIM_MODEL); ki += 1
    fw2, fb2 = _linear(keys[ki], DIM_MODEL, NUM_CLASSES); ki += 1
    # pad fc2 to 128 output lanes (zeros; wrapper slices [:, :NUM_CLASSES] before argmax)
    hw2_pad = jnp.zeros((DIM_MODEL, PAD_CLASSES), jnp.float32).at[:, :NUM_CLASSES].set(fw2)
    hb2_pad = jnp.zeros((1, PAD_CLASSES), jnp.float32).at[:, :NUM_CLASSES].set(fb2[None, :])
    # TODO(synk): head assumed linear fc1 -> fc2 (no activation between), so the two
    # matrices are pre-folded here once, outside the kernel.
    hw_fold = fw1 @ hw2_pad                         # (S*D, 128)
    hb_fold = fb1[None, :] @ hw2_pad + hb2_pad      # (1, 128)
    slab = put(slab, "hw", hw_fold)
    slab = put(slab, "hb", hb_fold)
    return slab


# ----------------------------- main ------------------------------------------
if __name__ == "__main__":
    key = jax.random.PRNGKey(0)
    kx, kp = jax.random.split(key)
    B = 2
    x = jax.random.normal(kx, (B, NUM_PKT, DIM_MODEL), jnp.float32)
    slab = init_params(kp)

    fwd = jax.jit(transformer_flow_forward)
    logits, preds = fwd(x, slab)
    jax.block_until_ready((logits, preds))
    assert logits.shape == (B, NUM_CLASSES)
    assert preds.shape == (B,)
    print("KERNEL_OK")
</pallas_src>

<mosaic_0001>
module attributes {stable_mosaic.version = 11 : i64} {
  func.func @kernel(%arg0: memref<16x32xf32, #tpu.memory_space<vmem>>, %arg1: memref<808x128xf32, #tpu.memory_space<vmem>>, %arg2: memref<2x128xf32, #tpu.memory_space<vmem>>, %arg3: memref<16x32xf32, #tpu.memory_space<vmem>>) attributes {dimension_semantics = [], scalar_prefetch = 0 : i64, scratch_operands = 1 : i64, tpu.core_type = #tpu.core_type<tc>} {
    %0 = tpu.iota {dimensions = array<i32: 1>} : vector<1x32xi32>
    %c0_i32 = arith.constant 0 : i32
    %1 = vector.broadcast %c0_i32 : i32 to vector<1x32xi32>
    %2 = arith.cmpi sge, %0, %1 : vector<1x32xi32>
    %c8_i32 = arith.constant 8 : i32
    %3 = vector.broadcast %c8_i32 : i32 to vector<1x32xi32>
    %4 = arith.cmpi slt, %0, %3 : vector<1x32xi32>
    %5 = arith.andi %2, %4 : vector<1x32xi1>
    %cst = arith.constant 1.000000e+00 : f32
    %cst_0 = arith.constant 0.000000e+00 : f32
    %6 = vector.broadcast %cst : f32 to vector<1x32xf32>
    %7 = vector.broadcast %cst_0 : f32 to vector<1x32xf32>
    %8 = arith.select %5, %6, %7 : vector<1x32xi1>, vector<1x32xf32>
    %c8_i32_1 = arith.constant 8 : i32
    %9 = vector.broadcast %c8_i32_1 : i32 to vector<1x32xi32>
    %10 = arith.cmpi sge, %0, %9 : vector<1x32xi32>
    %c16_i32 = arith.constant 16 : i32
    %11 = vector.broadcast %c16_i32 : i32 to vector<1x32xi32>
    %12 = arith.cmpi slt, %0, %11 : vector<1x32xi32>
    %13 = arith.andi %10, %12 : vector<1x32xi1>
    %cst_2 = arith.constant 1.000000e+00 : f32
    %cst_3 = arith.constant 0.000000e+00 : f32
    %14 = vector.broadcast %cst_2 : f32 to vector<1x32xf32>
    %15 = vector.broadcast %cst_3 : f32 to vector<1x32xf32>
    %16 = arith.select %13, %14, %15 : vector<1x32xi1>, vector<1x32xf32>
    %c16_i32_4 = arith.constant 16 : i32
    %17 = vector.broadcast %c16_i32_4 : i32 to vector<1x32xi32>
    %18 = arith.cmpi sge, %0, %17 : vector<1x32xi32>
    %c24_i32 = arith.constant 24 : i32
    %19 = vector.broadcast %c24_i32 : i32 to vector<1x32xi32>
    %20 = arith.cmpi slt, %0, %19 : vector<1x32xi32>
    %21 = arith.andi %18, %20 : vector<1x32xi1>
    %cst_5 = arith.constant 1.000000e+00 : f32
    %cst_6 = arith.constant 0.000000e+00 : f32
    %22 = vector.broadcast %cst_5 : f32 to vector<1x32xf32>
    %23 = vector.broadcast %cst_6 : f32 to vector<1x32xf32>
    %24 = arith.select %21, %22, %23 : vector<1x32xi1>, vector<1x32xf32>
    %c24_i32_7 = arith.constant 24 : i32
    %25 = vector.broadcast %c24_i32_7 : i32 to vector<1x32xi32>
    %26 = arith.cmpi sge, %0, %25 : vector<1x32xi32>
    %c32_i32 = arith.constant 32 : i32
    %27 = vector.broadcast %c32_i32 : i32 to vector<1x32xi32>
    %28 = arith.cmpi slt, %0, %27 : vector<1x32xi32>
    %29 = arith.andi %26, %28 : vector<1x32xi1>
    %cst_8 = arith.constant 1.000000e+00 : f32
    %cst_9 = arith.constant 0.000000e+00 : f32
    %30 = vector.broadcast %cst_8 : f32 to vector<1x32xf32>
    %31 = vector.broadcast %cst_9 : f32 to vector<1x32xf32>
    %32 = arith.select %29, %30, %31 : vector<1x32xi1>, vector<1x32xf32>
    %33 = tpu.iota {dimensions = array<i32: 0>} : vector<16x16xi32>
    %34 = tpu.iota {dimensions = array<i32: 1>} : vector<16x16xi32>
    %c3_i32 = arith.constant 3 : i32
    %35 = vector.broadcast %c3_i32 : i32 to vector<16x16xi32>
    %36 = arith.shrsi %33, %35 : vector<16x16xi32>
    %c3_i32_10 = arith.constant 3 : i32
    %37 = vector.broadcast %c3_i32_10 : i32 to vector<16x16xi32>
    %38 = arith.shrsi %34, %37 : vector<16x16xi32>
    %39 = arith.cmpi eq, %36, %38 : vector<16x16xi32>
    %cst_11 = arith.constant 0.000000e+00 : f32
    %cst_12 = arith.constant -1.000000e+30 : f32
    %40 = vector.broadcast %cst_11 : f32 to vector<16x16xf32>
    %41 = vector.broadcast %cst_12 : f32 to vector<16x16xf32>
    %42 = arith.select %39, %40, %41 : vector<16x16xi1>, vector<16x16xf32>
    %c0 = arith.constant 0 : index
    %c0_13 = arith.constant 0 : index
    %43 = vector.load %arg1[%c0, %c0_13] : memref<808x128xf32, #tpu.memory_space<vmem>>, vector<8x32xf32>
    %c0_14 = arith.constant 0 : index
    %c0_15 = arith.constant 0 : index
    %44 = vector.load %arg0[%c0_14, %c0_15] : memref<16x32xf32, #tpu.memory_space<vmem>>, vector<16x32xf32>
    %45 = tpu.concatenate %43, %43 in 0 : vector<8x32xf32>, vector<8x32xf32> -> vector<16x32xf32>
    %46 = arith.addf %44, %45 : vector<16x32xf32>
    %c8 = arith.constant 8 : index
    %c0_16 = arith.constant 0 : index
    %47 = vector.load %arg1[%c8, %c0_16] : memref<808x128xf32, #tpu.memory_space<vmem>>, vector<1x32xf32>
    %c9 = arith.constant 9 : index
    %c0_17 = arith.constant 0 : index
    %48 = vector.load %arg1[%c9, %c0_17] : memref<808x128xf32, #tpu.memory_space<vmem>>, vector<1x32xf32>
    %cst_18 = arith.constant dense<0.000000e+00> : vector<16xf32>
    %49 = vector.multi_reduction <add>, %46, %cst_18 [1] : vector<16x32xf32> to vector<16xf32>
    %50 = vector.shape_cast %49 : vector<16xf32> to vector<16x1xf32>
    %cst_19 = arith.constant 3.200000e+01 : f32
    %51 = vector.broadcast %cst_19 : f32 to vector<16x1xf32>
    %52 = arith.divf %50, %51 : vector<16x1xf32>
    %53 = vector.broadcast %52 : vector<16x1xf32> to vector<16x32xf32>
    %54 = arith.subf %46, %53 : vector<16x32xf32>
    %55 = arith.mulf %54, %54 : vector<16x32xf32>
    %cst_20 = arith.constant dense<0.000000e+00> : vector<16xf32>
    %56 = vector.multi_reduction <add>, %55, %cst_20 [1] : vector<16x32xf32> to vector<16xf32>
    %57 = vector.shape_cast %56 : vector<16xf32> to vector<16x1xf32>
    %cst_21 = arith.constant 0.0322580636 : f32
    %58 = vector.broadcast %cst_21 : f32 to vector<16x1xf32>
    %59 = arith.mulf %57, %58 : vector<16x1xf32>
    %60 = vector.broadcast %47 : vector<1x32xf32> to vector<16x32xf32>
    %61 = arith.mulf %60, %54 : vector<16x32xf32>
    %62 = math.sqrt %59 : vector<16x1xf32>
    %cst_22 = arith.constant 9.99999997E-7 : f32
    %63 = vector.broadcast %cst_22 : f32 to vector<16x1xf32>
    %64 = arith.addf %62, %63 : vector<16x1xf32>
    %65 = vector.broadcast %64 : vector<16x1xf32> to vector<16x32xf32>
    %66 = arith.divf %61, %65 : vector<16x32xf32>
    %67 = vector.broadcast %48 : vector<1x32xf32> to vector<16x32xf32>
    %68 = arith.addf %66, %67 : vector<16x32xf32>
    %c16 = arith.constant 16 : index
    %c0_23 = arith.constant 0 : index
    %69 = vector.load %arg1[%c16, %c0_23] : memref<808x128xf32, #tpu.memory_space<vmem>>, vector<32x32xf32>
    %cst_24 = arith.constant dense<0.000000e+00> : vector<16x32xf32>
    %70 = tpu.matmul %68, %69, %cst_24 {dimension_numbers = #tpu.dot_dimension_numbers<[1], [0], [0], [1], [0, 0, 1, 1], [], []>} : vector<16x32xf32>, vector<32x32xf32>, vector<16x32xf32> -> vector<16x32xf32>
    %c112 = arith.constant 112 : index
    %c0_25 = arith.constant 0 : index
    %71 = vector.load %arg1[%c112, %c0_25] : memref<808x128xf32, #tpu.memory_space<vmem>>, vector<1x32xf32>
    %72 = vector.broadcast %71 : vector<1x32xf32> to vector<16x32xf32>
    %73 = arith.addf %70, %72 : vector<16x32xf32>
    %c48 = arith.constant 48 : index
    %c0_26 = arith.constant 0 : index
    %74 = vector.load %arg1[%c48, %c0_26] : memref<808x128xf32, #tpu.memory_space<vmem>>, vector<32x32xf32>
    %cst_27 = arith.constant dense<0.000000e+00> : vector<16x32xf32>
    %75 = tpu.matmul %68, %74, %cst_27 {dimension_numbers = #tpu.dot_dimension_numbers<[1], [0], [0], [1], [0, 0, 1, 1], [], []>} : vector<16x32xf32>, vector<32x32xf32>, vector<16x32xf32> -> vector<16x32xf32>
    %c113 = arith.constant 113 : index
    %c0_28 = arith.constant 0 : index
    %76 = vector.load %arg1[%c113, %c0_28] : memref<808x128xf32, #tpu.memory_space<vmem>>, vector<1x32xf32>
    %77 = vector.broadcast %76 : vector<1x32xf32> to vector<16x32xf32>
    %78 = arith.addf %75, %77 : vector<16x32xf32>
    %c80 = arith.constant 80 : index
    %c0_29 = arith.constant 0 : index
    %79 = vector.load %arg1[%c80, %c0_29] : memref<808x128xf32, #tpu.memory_space<vmem>>, vector<32x32xf32>
    %cst_30 = arith.constant dense<0.000000e+00> : vector<16x32xf32>
    %80 = tpu.matmul %68, %79, %cst_30 {dimension_numbers = #tpu.dot_dimension_numbers<[1], [0], [0], [1], [0, 0, 1, 1], [], []>} : vector<16x32xf32>, vector<32x32xf32>, vector<16x32xf32> -> vector<16x32xf32>
    %c114 = arith.constant 114 : index
    %c0_31 = arith.constant 0 : index
    %81 = vector.load %arg1[%c114, %c0_31] : memref<808x128xf32, #tpu.memory_space<vmem>>, vector<1x32xf32>
    %82 = vector.broadcast %81 : vector<1x32xf32> to vector<16x32xf32>
    %83 = arith.addf %80, %82 : vector<16x32xf32>
    %cst_32 = arith.constant 0.000000e+00 : f32
    %84 = vector.broadcast %cst_32 : f32 to vector<16x32xf32>
    %85 = vector.broadcast %8 : vector<1x32xf32> to vector<16x32xf32>
    %86 = arith.mulf %78, %85 : vector<16x32xf32>
    %cst_33 = arith.constant dense<0.000000e+00> : vector<16x16xf32>
    %87 = tpu.matmul %73, %86, %cst_33 {dimension_numbers = #tpu.dot_dimension_numbers<[1], [1], [0], [0], [0, 0, 1, 0], [], []>} : vector<16x32xf32>, vector<16x32xf32>, vector<16x16xf32> -> vector<16x16xf32>
    %cst_34 = arith.constant 0.353553385 : f32
    %88 = vector.broadcast %cst_34 : f32 to vector<16x16xf32>
    %89 = arith.mulf %87, %88 : vector<16x16xf32>
    %90 = arith.addf %89, %42 : vector<16x16xf32>
    %cst_35 = arith.constant dense<0xFF800000> : vector<16xf32>
    %91 = vector.multi_reduction <maximumf>, %90, %cst_35 [1] : vector<16x16xf32> to vector<16xf32>
    %92 = vector.shape_cast %91 : vector<16xf32> to vector<16x1xf32>
    %93 = vector.broadcast %92 : vector<16x1xf32> to vector<16x16xf32>
    %94 = arith.subf %90, %93 : vector<16x16xf32>
    %95 = math.exp %94 : vector<16x16xf32>
    %cst_36 = arith.constant dense<0.000000e+00> : vector<16xf32>
    %96 = vector.multi_reduction <add>, %95, %cst_36 [1] : vector<16x16xf32> to vector<16xf32>
    %97 = vector.shape_cast %96 : vector<16xf32> to vector<16x1xf32>
    %98 = tpu.reciprocal %97 {approx = true} : vector<16x1xf32> -> vector<16x1xf32>
    %99 = vector.broadcast %98 : vector<16x1xf32> to vector<16x16xf32>
    %100 = arith.mulf %95, %99 : vector<16x16xf32>
    %101 = vector.broadcast %8 : vector<1x32xf32> to vector<16x32xf32>
    %102 = arith.mulf %83, %101 : vector<16x32xf32>
    %cst_37 = arith.constant dense<0.000000e+00> : vector<16x32xf32>
    %103 = tpu.matmul %100, %102, %cst_37 {dimension_numbers = #tpu.dot_dimension_numbers<[1], [0], [0], [1], [0, 0, 1, 1], [], []>} : vector<16x16xf32>, vector<16x32xf32>, vector<16x32xf32> -> vector<16x32xf32>
    %104 = arith.addf %84, %103 : vector<16x32xf32>
    %105 = vector.broadcast %16 : vector<1x32xf32> to vector<16x32xf32>
    %106 = arith.mulf %78, %105 : vector<16x32xf32>
    %cst_38 = arith.constant dense<0.000000e+00> : vector<16x16xf32>
    %107 = tpu.matmul %73, %106, %cst_38 {dimension_numbers = #tpu.dot_dimension_numbers<[1], [1], [0], [0], [0, 0, 1, 0], [], []>} : vector<16x32xf32>, vector<16x32xf32>, vector<16x16xf32> -> vector<16x16xf32>
    %cst_39 = arith.constant 0.353553385 : f32
    %108 = vector.broadcast %cst_39 : f32 to vector<16x16xf32>
    %109 = arith.mulf %107, %108 : vector<16x16xf32>
    %110 = arith.addf %109, %42 : vector<16x16xf32>
    %cst_40 = arith.constant dense<0xFF800000> : vector<16xf32>
    %111 = vector.multi_reduction <maximumf>, %110, %cst_40 [1] : vector<16x16xf32> to vector<16xf32>
    %112 = vector.shape_cast %111 : vector<16xf32> to vector<16x1xf32>
    %113 = vector.broadcast %112 : vector<16x1xf32> to vector<16x16xf32>
    %114 = arith.subf %110, %113 : vector<16x16xf32>
    %115 = math.exp %114 : vector<16x16xf32>
    %cst_41 = arith.constant dense<0.000000e+00> : vector<16xf32>
    %116 = vector.multi_reduction <add>, %115, %cst_41 [1] : vector<16x16xf32> to vector<16xf32>
    %117 = vector.shape_cast %116 : vector<16xf32> to vector<16x1xf32>
    %118 = tpu.reciprocal %117 {approx = true} : vector<16x1xf32> -> vector<16x1xf32>
    %119 = vector.broadcast %118 : vector<16x1xf32> to vector<16x16xf32>
    %120 = arith.mulf %115, %119 : vector<16x16xf32>
    %121 = vector.broadcast %16 : vector<1x32xf32> to vector<16x32xf32>
    %122 = arith.mulf %83, %121 : vector<16x32xf32>
    %cst_42 = arith.constant dense<0.000000e+00> : vector<16x32xf32>
    %123 = tpu.matmul %120, %122, %cst_42 {dimension_numbers = #tpu.dot_dimension_numbers<[1], [0], [0], [1], [0, 0, 1, 1], [], []>} : vector<16x16xf32>, vector<16x32xf32>, vector<16x32xf32> -> vector<16x32xf32>
    %124 = arith.addf %104, %123 : vector<16x32xf32>
    %125 = vector.broadcast %24 : vector<1x32xf32> to vector<16x32xf32>
    %126 = arith.mulf %78, %125 : vector<16x32xf32>
    %cst_43 = arith.constant dense<0.000000e+00> : vector<16x16xf32>
    %127 = tpu.matmul %73, %126, %cst_43 {dimension_numbers = #tpu.dot_dimension_numbers<[1], [1], [0], [0], [0, 0, 1, 0], [], []>} : vector<16x32xf32>, vector<16x32xf32>, vector<16x16xf32> -> vector<16x16xf32>
    %cst_44 = arith.constant 0.353553385 : f32
    %128 = vector.broadcast %cst_44 : f32 to vector<16x16xf32>
    %129 = arith.mulf %127, %128 : vector<16x16xf32>
    %130 = arith.addf %129, %42 : vector<16x16xf32>
    %cst_45 = arith.constant dense<0xFF800000> : vector<16xf32>
    %131 = vector.multi_reduction <maximumf>, %130, %cst_45 [1] : vector<16x16xf32> to vector<16xf32>
    %132 = vector.shape_cast %131 : vector<16xf32> to vector<16x1xf32>
    %133 = vector.broadcast %132 : vector<16x1xf32> to vector<16x16xf32>
    %134 = arith.subf %130, %133 : vector<16x16xf32>
    %135 = math.exp %134 : vector<16x16xf32>
    %cst_46 = arith.constant dense<0.000000e+00> : vector<16xf32>
    %136 = vector.multi_reduction <add>, %135, %cst_46 [1] : vector<16x16xf32> to vector<16xf32>
    %137 = vector.shape_cast %136 : vector<16xf32> to vector<16x1xf32>
    %138 = tpu.reciprocal %137 {approx = true} : vector<16x1xf32> -> vector<16x1xf32>
    %139 = vector.broadcast %138 : vector<16x1xf32> to vector<16x16xf32>
    %140 = arith.mulf %135, %139 : vector<16x16xf32>
    %141 = vector.broadcast %24 : vector<1x32xf32> to vector<16x32xf32>
    %142 = arith.mulf %83, %141 : vector<16x32xf32>
    %cst_47 = arith.constant dense<0.000000e+00> : vector<16x32xf32>
    %143 = tpu.matmul %140, %142, %cst_47 {dimension_numbers = #tpu.dot_dimension_numbers<[1], [0], [0], [1], [0, 0, 1, 1], [], []>} : vector<16x16xf32>, vector<16x32xf32>, vector<16x32xf32> -> vector<16x32xf32>
    %144 = arith.addf %124, %143 : vector<16x32xf32>
    %145 = vector.broadcast %32 : vector<1x32xf32> to vector<16x32xf32>
    %146 = arith.mulf %78, %145 : vector<16x32xf32>
    %cst_48 = arith.constant dense<0.000000e+00> : vector<16x16xf32>
    %147 = tpu.matmul %73, %146, %cst_48 {dimension_numbers = #tpu.dot_dimension_numbers<[1], [1], [0], [0], [0, 0, 1, 0], [], []>} : vector<16x32xf32>, vector<16x32xf32>, vector<16x16xf32> -> vector<16x16xf32>
    %cst_49 = arith.constant 0.353553385 : f32
    %148 = vector.broadcast %cst_49 : f32 to vector<16x16xf32>
    %149 = arith.mulf %147, %148 : vector<16x16xf32>
    %150 = arith.addf %149, %42 : vector<16x16xf32>
    %cst_50 = arith.constant dense<0xFF800000> : vector<16xf32>
    %151 = vector.multi_reduction <maximumf>, %150, %cst_50 [1] : vector<16x16xf32> to vector<16xf32>
    %152 = vector.shape_cast %151 : vector<16xf32> to vector<16x1xf32>
    %153 = vector.broadcast %152 : vector<16x1xf32> to vector<16x16xf32>
    %154 = arith.subf %150, %153 : vector<16x16xf32>
    %155 = math.exp %154 : vector<16x16xf32>
    %cst_51 = arith.constant dense<0.000000e+00> : vector<16xf32>
    %156 = vector.multi_reduction <add>, %155, %cst_51 [1] : vector<16x16xf32> to vector<16xf32>
    %157 = vector.shape_cast %156 : vector<16xf32> to vector<16x1xf32>
    %158 = tpu.reciprocal %157 {approx = true} : vector<16x1xf32> -> vector<16x1xf32>
    %159 = vector.broadcast %158 : vector<16x1xf32> to vector<16x16xf32>
    %160 = arith.mulf %155, %159 : vector<16x16xf32>
    %161 = vector.broadcast %32 : vector<1x32xf32> to vector<16x32xf32>
    %162 = arith.mulf %83, %161 : vector<16x32xf32>
    %cst_52 = arith.constant dense<0.000000e+00> : vector<16x32xf32>
    %163 = tpu.matmul %160, %162, %cst_52 {dimension_numbers = #tpu.dot_dimension_numbers<[1], [0], [0], [1], [0, 0, 1, 1], [], []>} : vector<16x16xf32>, vector<16x32xf32>, vector<16x32xf32> -> vector<16x32xf32>
    %164 = arith.addf %144, %163 : vector<16x32xf32>
    %c120 = arith.constant 120 : index
    %c0_53 = arith.constant 0 : index
    %165 = vector.load %arg1[%c120, %c0_53] : memref<808x128xf32, #tpu.memory_space<vmem>>, vector<32x32xf32>
    %cst_54 = arith.constant dense<0.000000e+00> : vector<16x32xf32>
    %166 = tpu.matmul %164, %165, %cst_54 {dimension_numbers = #tpu.dot_dimension_numbers<[1], [0], [0], [1], [0, 0, 1, 1], [], []>} : vector<16x32xf32>, vector<32x32xf32>, vector<16x32xf32> -> vector<16x32xf32>
    %c152 = arith.constant 152 : index
    %c0_55 = arith.constant 0 : index
    %167 = vector.load %arg1[%c152, %c0_55] : memref<808x128xf32, #tpu.memory_space<vmem>>, vector<1x32xf32>
    %168 = vector.broadcast %167 : vector<1x32xf32> to vector<16x32xf32>
    %169 = arith.addf %166, %168 : vector<16x32xf32>
    %170 = arith.addf %46, %169 : vector<16x32xf32>
    %c10 = arith.constant 10 : index
    %c0_56 = arith.constant 0 : index
    %171 = vector.load %arg1[%c10, %c0_56] : memref<808x128xf32, #tpu.memory_space<vmem>>, vector<1x32xf32>
    %c11 = arith.constant 11 : index
    %c0_57 = arith.constant 0 : index
    %172 = vector.load %arg1[%c11, %c0_57] : memref<808x128xf32, #tpu.memory_space<vmem>>, vector<1x32xf32>
    %cst_58 = arith.constant dense<0.000000e+00> : vector<16xf32>
    %173 = vector.multi_reduction <add>, %170, %cst_58 [1] : vector<16x32xf32> to vector<16xf32>
    %174 = vector.shape_cast %173 : vector<16xf32> to vector<16x1xf32>
    %cst_59 = arith.constant 3.200000e+01 : f32
    %175 = vector.broadcast %cst_59 : f32 to vector<16x1xf32>
    %176 = arith.divf %174, %175 : vector<16x1xf32>
    %177 = vector.broadcast %176 : vector<16x1xf32> to vector<16x32xf32>
    %178 = arith.subf %170, %177 : vector<16x32xf32>
    %179 = arith.mulf %178, %178 : vector<16x32xf32>
    %cst_60 = arith.constant dense<0.000000e+00> : vector<16xf32>
    %180 = vector.multi_reduction <add>, %179, %cst_60 [1] : vector<16x32xf32> to vector<16xf32>
    %181 = vector.shape_cast %180 : vector<16xf32> to vector<16x1xf32>
    %cst_61 = arith.constant 0.0322580636 : f32
    %182 = vector.broadcast %cst_61 : f32 to vector<16x1xf32>
    %183 = arith.mulf %181, %182 : vector<16x1xf32>
    %184 = vector.broadcast %171 : vector<1x32xf32> to vector<16x32xf32>
    %185 = arith.mulf %184, %178 : vector<16x32xf32>
    %186 = math.sqrt %183 : vector<16x1xf32>
    %cst_62 = arith.constant 9.99999997E-7 : f32
    %187 = vector.broadcast %cst_62 : f32 to vector<16x1xf32>
    %188 = arith.addf %186, %187 : vector<16x1xf32>
    %189 = vector.broadcast %188 : vector<16x1xf32> to vector<16x32xf32>
    %190 = arith.divf %185, %189 : vector<16x32xf32>
    %191 = vector.broadcast %172 : vector<1x32xf32> to vector<16x32xf32>
    %192 = arith.addf %190, %191 : vector<16x32xf32>
    %c160 = arith.constant 160 : index
    %c0_63 = arith.constant 0 : index
    %193 = vector.load %arg1[%c160, %c0_63] : memref<808x128xf32, #tpu.memory_space<vmem>>, vector<32x64xf32>
    %c192 = arith.constant 192 : index
    %c0_64 = arith.constant 0 : index
    %194 = vector.load %arg1[%c192, %c0_64] : memref<808x128xf32, #tpu.memory_space<vmem>>, vector<1x64xf32>
    %c200 = arith.constant 200 : index
    %c0_65 = arith.constant 0 : index
    %195 = vector.load %arg1[%c200, %c0_65] : memref<808x128xf32, #tpu.memory_space<vmem>>, vector<64x32xf32>
    %c264 = arith.constant 264 : index
    %c0_66 = arith.constant 0 : index
    %196 = vector.load %arg1[%c264, %c0_66] : memref<808x128xf32, #tpu.memory_space<vmem>>, vector<1x32xf32>
    %cst_67 = arith.constant dense<0.000000e+00> : vector<16x64xf32>
    %197 = tpu.matmul %192, %193, %cst_67 {dimension_numbers = #tpu.dot_dimension_numbers<[1], [0], [0], [1], [0, 0, 1, 1], [], []>} : vector<16x32xf32>, vector<32x64xf32>, vector<16x64xf32> -> vector<16x64xf32>
    %198 = vector.broadcast %194 : vector<1x64xf32> to vector<16x64xf32>
    %199 = arith.addf %197, %198 : vector<16x64xf32>
    %cst_68 = arith.constant 0.000000e+00 : f32
    %200 = vector.broadcast %cst_68 : f32 to vector<16x64xf32>
    %201 = arith.maximumf %199, %200 : vector<16x64xf32>
    %cst_69 = arith.constant dense<0.000000e+00> : vector<16x32xf32>
    %202 = tpu.matmul %201, %195, %cst_69 {dimension_numbers = #tpu.dot_dimension_numbers<[1], [0], [0], [1], [0, 0, 1, 1], [], []>} : vector<16x64xf32>, vector<64x32xf32>, vector<16x32xf32> -> vector<16x32xf32>
    %203 = vector.broadcast %196 : vector<1x32xf32> to vector<16x32xf32>
    %204 = arith.addf %202, %203 : vector<16x32xf32>
    %205 = arith.addf %170, %204 : vector<16x32xf32>
    %c272 = arith.constant 272 : index
    %c0_70 = arith.constant 0 : index
    %206 = vector.load %arg1[%c272, %c0_70] : memref<808x128xf32, #tpu.memory_space<vmem>>, vector<1x32xf32>
    %c273 = arith.constant 273 : index
    %c0_71 = arith.constant 0 : index
    %207 = vector.load %arg1[%c273, %c0_71] : memref<808x128xf32, #tpu.memory_space<vmem>>, vector<1x32xf32>
    %cst_72 = arith.constant dense<0.000000e+00> : vector<16xf32>
    %208 = vector.multi_reduction <add>, %205, %cst_72 [1] : vector<16x32xf32> to vector<16xf32>
    %209 = vector.shape_cast %208 : vector<16xf32> to vector<16x1xf32>
    %cst_73 = arith.constant 3.200000e+01 : f32
    %210 = vector.broadcast %cst_73 : f32 to vector<16x1xf32>
    %211 = arith.divf %209, %210 : vector<16x1xf32>
    %212 = vector.broadcast %211 : vector<16x1xf32> to vector<16x32xf32>
    %213 = arith.subf %205, %212 : vector<16x32xf32>
    %214 = arith.mulf %213, %213 : vector<16x32xf32>
    %cst_74 = arith.constant dense<0.000000e+00> : vector<16xf32>
    %215 = vector.multi_reduction <add>, %214, %cst_74 [1] : vector<16x32xf32> to vector<16xf32>
    %216 = vector.shape_cast %215 : vector<16xf32> to vector<16x1xf32>
    %cst_75 = arith.constant 0.0322580636 : f32
    %217 = vector.broadcast %cst_75 : f32 to vector<16x1xf32>
    %218 = arith.mulf %216, %217 : vector<16x1xf32>
    %219 = vector.broadcast %206 : vector<1x32xf32> to vector<16x32xf32>
    %220 = arith.mulf %219, %213 : vector<16x32xf32>
    %221 = math.sqrt %218 : vector<16x1xf32>
    %cst_76 = arith.constant 9.99999997E-7 : f32
    %222 = vector.broadcast %cst_76 : f32 to vector<16x1xf32>
    %223 = arith.addf %221, %222 : vector<16x1xf32>
    %224 = vector.broadcast %223 : vector<16x1xf32> to vector<16x32xf32>
    %225 = arith.divf %220, %224 : vector<16x32xf32>
    %226 = vector.broadcast %207 : vector<1x32xf32> to vector<16x32xf32>
    %227 = arith.addf %225, %226 : vector<16x32xf32>
    %c280 = arith.constant 280 : index
    %c0_77 = arith.constant 0 : index
    %228 = vector.load %arg1[%c280, %c0_77] : memref<808x128xf32, #tpu.memory_space<vmem>>, vector<32x32xf32>
    %cst_78 = arith.constant dense<0.000000e+00> : vector<16x32xf32>
    %229 = tpu.matmul %227, %228, %cst_78 {dimension_numbers = #tpu.dot_dimension_numbers<[1], [0], [0], [1], [0, 0, 1, 1], [], []>} : vector<16x32xf32>, vector<32x32xf32>, vector<16x32xf32> -> vector<16x32xf32>
    %c376 = arith.constant 376 : index
    %c0_79 = arith.constant 0 : index
    %230 = vector.load %arg1[%c376, %c0_79] : memref<808x128xf32, #tpu.memory_space<vmem>>, vector<1x32xf32>
    %231 = vector.broadcast %230 : vector<1x32xf32> to vector<16x32xf32>
    %232 = arith.addf %229, %231 : vector<16x32xf32>
    %c312 = arith.constant 312 : index
    %c0_80 = arith.constant 0 : index
    %233 = vector.load %arg1[%c312, %c0_80] : memref<808x128xf32, #tpu.memory_space<vmem>>, vector<32x32xf32>
    %cst_81 = arith.constant dense<0.000000e+00> : vector<16x32xf32>
    %234 = tpu.matmul %227, %233, %cst_81 {dimension_numbers = #tpu.dot_dimension_numbers<[1], [0], [0], [1], [0, 0, 1, 1], [], []>} : vector<16x32xf32>, vector<32x32xf32>, vector<16x32xf32> -> vector<16x32xf32>
    %c377 = arith.constant 377 : index
    %c0_82 = arith.constant 0 : index
    %235 = vector.load %arg1[%c377, %c0_82] : memref<808x128xf32, #tpu.memory_space<vmem>>, vector<1x32xf32>
    %236 = vector.broadcast %235 : vector<1x32xf32> to vector<16x32xf32>
    %237 = arith.addf %234, %236 : vector<16x32xf32>
    %c344 = arith.constant 344 : index
    %c0_83 = arith.constant 0 : index
    %238 = vector.load %arg1[%c344, %c0_83] : memref<808x128xf32, #tpu.memory_space<vmem>>, vector<32x32xf32>
    %cst_84 = arith.constant dense<0.000000e+00> : vector<16x32xf32>
    %239 = tpu.matmul %227, %238, %cst_84 {dimension_numbers = #tpu.dot_dimension_numbers<[1], [0], [0], [1], [0, 0, 1, 1], [], []>} : vector<16x32xf32>, vector<32x32xf32>, vector<16x32xf32> -> vector<16x32xf32>
    %c378 = arith.constant 378 : index
    %c0_85 = arith.constant 0 : index
    %240 = vector.load %arg1[%c378, %c0_85] : memref<808x128xf32, #tpu.memory_space<vmem>>, vector<1x32xf32>
    %241 = vector.broadcast %240 : vector<1x32xf32> to vector<16x32xf32>
    %242 = arith.addf %239, %241 : vector<16x32xf32>
    %cst_86 = arith.constant 0.000000e+00 : f32
    %243 = vector.broadcast %cst_86 : f32 to vector<16x32xf32>
    %244 = vector.broadcast %8 : vector<1x32xf32> to vector<16x32xf32>
    %245 = arith.mulf %237, %244 : vector<16x32xf32>
    %cst_87 = arith.constant dense<0.000000e+00> : vector<16x16xf32>
    %246 = tpu.matmul %232, %245, %cst_87 {dimension_numbers = #tpu.dot_dimension_numbers<[1], [1], [0], [0], [0, 0, 1, 0], [], []>} : vector<16x32xf32>, vector<16x32xf32>, vector<16x16xf32> -> vector<16x16xf32>
    %cst_88 = arith.constant 0.353553385 : f32
    %247 = vector.broadcast %cst_88 : f32 to vector<16x16xf32>
    %248 = arith.mulf %246, %247 : vector<16x16xf32>
    %249 = arith.addf %248, %42 : vector<16x16xf32>
    %cst_89 = arith.constant dense<0xFF800000> : vector<16xf32>
    %250 = vector.multi_reduction <maximumf>, %249, %cst_89 [1] : vector<16x16xf32> to vector<16xf32>
    %251 = vector.shape_cast %250 : vector<16xf32> to vector<16x1xf32>
    %252 = vector.broadcast %251 : vector<16x1xf32> to vector<16x16xf32>
    %253 = arith.subf %249, %252 : vector<16x16xf32>
    %254 = math.exp %253 : vector<16x16xf32>
    %cst_90 = arith.constant dense<0.000000e+00> : vector<16xf32>
    %255 = vector.multi_reduction <add>, %254, %cst_90 [1] : vector<16x16xf32> to vector<16xf32>
    %256 = vector.shape_cast %255 : vector<16xf32> to vector<16x1xf32>
    %257 = tpu.reciprocal %256 {approx = true} : vector<16x1xf32> -> vector<16x1xf32>
    %258 = vector.broadcast %257 : vector<16x1xf32> to vector<16x16xf32>
    %259 = arith.mulf %254, %258 : vector<16x16xf32>
    %260 = vector.broadcast %8 : vector<1x32xf32> to vector<16x32xf32>
    %261 = arith.mulf %242, %260 : vector<16x32xf32>
    %cst_91 = arith.constant dense<0.000000e+00> : vector<16x32xf32>
    %262 = tpu.matmul %259, %261, %cst_91 {dimension_numbers = #tpu.dot_dimension_numbers<[1], [0], [0], [1], [0, 0, 1, 1], [], []>} : vector<16x16xf32>, vector<16x32xf32>, vector<16x32xf32> -> vector<16x32xf32>
    %263 = arith.addf %243, %262 : vector<16x32xf32>
    %264 = vector.broadcast %16 : vector<1x32xf32> to vector<16x32xf32>
    %265 = arith.mulf %237, %264 : vector<16x32xf32>
    %cst_92 = arith.constant dense<0.000000e+00> : vector<16x16xf32>
    %266 = tpu.matmul %232, %265, %cst_92 {dimension_numbers = #tpu.dot_dimension_numbers<[1], [1], [0], [0], [0, 0, 1, 0], [], []>} : vector<16x32xf32>, vector<16x32xf32>, vector<16x16xf32> -> vector<16x16xf32>
    %cst_93 = arith.constant 0.353553385 : f32
    %267 = vector.broadcast %cst_93 : f32 to vector<16x16xf32>
    %268 = arith.mulf %266, %267 : vector<16x16xf32>
    %269 = arith.addf %268, %42 : vector<16x16xf32>
    %cst_94 = arith.constant dense<0xFF800000> : vector<16xf32>
    %270 = vector.multi_reduction <maximumf>, %269, %cst_94 [1] : vector<16x16xf32> to vector<16xf32>
    %271 = vector.shape_cast %270 : vector<16xf32> to vector<16x1xf32>
    %272 = vector.broadcast %271 : vector<16x1xf32> to vector<16x16xf32>
    %273 = arith.subf %269, %272 : vector<16x16xf32>
    %274 = math.exp %273 : vector<16x16xf32>
    %cst_95 = arith.constant dense<0.000000e+00> : vector<16xf32>
    %275 = vector.multi_reduction <add>, %274, %cst_95 [1] : vector<16x16xf32> to vector<16xf32>
    %276 = vector.shape_cast %275 : vector<16xf32> to vector<16x1xf32>
    %277 = tpu.reciprocal %276 {approx = true} : vector<16x1xf32> -> vector<16x1xf32>
    %278 = vector.broadcast %277 : vector<16x1xf32> to vector<16x16xf32>
    %279 = arith.mulf %274, %278 : vector<16x16xf32>
    %280 = vector.broadcast %16 : vector<1x32xf32> to vector<16x32xf32>
    %281 = arith.mulf %242, %280 : vector<16x32xf32>
    %cst_96 = arith.constant dense<0.000000e+00> : vector<16x32xf32>
    %282 = tpu.matmul %279, %281, %cst_96 {dimension_numbers = #tpu.dot_dimension_numbers<[1], [0], [0], [1], [0, 0, 1, 1], [], []>} : vector<16x16xf32>, vector<16x32xf32>, vector<16x32xf32> -> vector<16x32xf32>
    %283 = arith.addf %263, %282 : vector<16x32xf32>
    %284 = vector.broadcast %24 : vector<1x32xf32> to vector<16x32xf32>
    %285 = arith.mulf %237, %284 : vector<16x32xf32>
    %cst_97 = arith.constant dense<0.000000e+00> : vector<16x16xf32>
    %286 = tpu.matmul %232, %285, %cst_97 {dimension_numbers = #tpu.dot_dimension_numbers<[1], [1], [0], [0], [0, 0, 1, 0], [], []>} : vector<16x32xf32>, vector<16x32xf32>, vector<16x16xf32> -> vector<16x16xf32>
    %cst_98 = arith.constant 0.353553385 : f32
    %287 = vector.broadcast %cst_98 : f32 to vector<16x16xf32>
    %288 = arith.mulf %286, %287 : vector<16x16xf32>
    %289 = arith.addf %288, %42 : vector<16x16xf32>
    %cst_99 = arith.constant dense<0xFF800000> : vector<16xf32>
    %290 = vector.multi_reduction <maximumf>, %289, %cst_99 [1] : vector<16x16xf32> to vector<16xf32>
    %291 = vector.shape_cast %290 : vector<16xf32> to vector<16x1xf32>
    %292 = vector.broadcast %291 : vector<16x1xf32> to vector<16x16xf32>
    %293 = arith.subf %289, %292 : vector<16x16xf32>
    %294 = math.exp %293 : vector<16x16xf32>
    %cst_100 = arith.constant dense<0.000000e+00> : vector<16xf32>
    %295 = vector.multi_reduction <add>, %294, %cst_100 [1] : vector<16x16xf32> to vector<16xf32>
    %296 = vector.shape_cast %295 : vector<16xf32> to vector<16x1xf32>
    %297 = tpu.reciprocal %296 {approx = true} : vector<16x1xf32> -> vector<16x1xf32>
    %298 = vector.broadcast %297 : vector<16x1xf32> to vector<16x16xf32>
    %299 = arith.mulf %294, %298 : vector<16x16xf32>
    %300 = vector.broadcast %24 : vector<1x32xf32> to vector<16x32xf32>
    %301 = arith.mulf %242, %300 : vector<16x32xf32>
    %cst_101 = arith.constant dense<0.000000e+00> : vector<16x32xf32>
    %302 = tpu.matmul %299, %301, %cst_101 {dimension_numbers = #tpu.dot_dimension_numbers<[1], [0], [0], [1], [0, 0, 1, 1], [], []>} : vector<16x16xf32>, vector<16x32xf32>, vector<16x32xf32> -> vector<16x32xf32>
    %303 = arith.addf %283, %302 : vector<16x32xf32>
    %304 = vector.broadcast %32 : vector<1x32xf32> to vector<16x32xf32>
    %305 = arith.mulf %237, %304 : vector<16x32xf32>
    %cst_102 = arith.constant dense<0.000000e+00> : vector<16x16xf32>
    %306 = tpu.matmul %232, %305, %cst_102 {dimension_numbers = #tpu.dot_dimension_numbers<[1], [1], [0], [0], [0, 0, 1, 0], [], []>} : vector<16x32xf32>, vector<16x32xf32>, vector<16x16xf32> -> vector<16x16xf32>
    %cst_103 = arith.constant 0.353553385 : f32
    %307 = vector.broadcast %cst_103 : f32 to vector<16x16xf32>
    %308 = arith.mulf %306, %307 : vector<16x16xf32>
    %309 = arith.addf %308, %42 : vector<16x16xf32>
    %cst_104 = arith.constant dense<0xFF800000> : vector<16xf32>
    %310 = vector.multi_reduction <maximumf>, %309, %cst_104 [1] : vector<16x16xf32> to vector<16xf32>
    %311 = vector.shape_cast %310 : vector<16xf32> to vector<16x1xf32>
    %312 = vector.broadcast %311 : vector<16x1xf32> to vector<16x16xf32>
    %313 = arith.subf %309, %312 : vector<16x16xf32>
    %314 = math.exp %313 : vector<16x16xf32>
    %cst_105 = arith.constant dense<0.000000e+00> : vector<16xf32>
    %315 = vector.multi_reduction <add>, %314, %cst_105 [1] : vector<16x16xf32> to vector<16xf32>
    %316 = vector.shape_cast %315 : vector<16xf32> to vector<16x1xf32>
    %317 = tpu.reciprocal %316 {approx = true} : vector<16x1xf32> -> vector<16x1xf32>
    %318 = vector.broadcast %317 : vector<16x1xf32> to vector<16x16xf32>
    %319 = arith.mulf %314, %318 : vector<16x16xf32>
    %320 = vector.broadcast %32 : vector<1x32xf32> to vector<16x32xf32>
    %321 = arith.mulf %242, %320 : vector<16x32xf32>
    %cst_106 = arith.constant dense<0.000000e+00> : vector<16x32xf32>
    %322 = tpu.matmul %319, %321, %cst_106 {dimension_numbers = #tpu.dot_dimension_numbers<[1], [0], [0], [1], [0, 0, 1, 1], [], []>} : vector<16x16xf32>, vector<16x32xf32>, vector<16x32xf32> -> vector<16x32xf32>
    %323 = arith.addf %303, %322 : vector<16x32xf32>
    %c384 = arith.constant 384 : index
    %c0_107 = arith.constant 0 : index
    %324 = vector.load %arg1[%c384, %c0_107] : memref<808x128xf32, #tpu.memory_space<vmem>>, vector<32x32xf32>
    %cst_108 = arith.constant dense<0.000000e+00> : vector<16x32xf32>
    %325 = tpu.matmul %323, %324, %cst_108 {dimension_numbers = #tpu.dot_dimension_numbers<[1], [0], [0], [1], [0, 0, 1, 1], [], []>} : vector<16x32xf32>, vector<32x32xf32>, vector<16x32xf32> -> vector<16x32xf32>
    %c416 = arith.constant 416 : index
    %c0_109 = arith.constant 0 : index
    %326 = vector.load %arg1[%c416, %c0_109] : memref<808x128xf32, #tpu.memory_space<vmem>>, vector<1x32xf32>
    %327 = vector.broadcast %326 : vector<1x32xf32> to vector<16x32xf32>
    %328 = arith.addf %325, %327 : vector<16x32xf32>
    %329 = arith.addf %205, %328 : vector<16x32xf32>
    %c274 = arith.constant 274 : index
    %c0_110 = arith.constant 0 : index
    %330 = vector.load %arg1[%c274, %c0_110] : memref<808x128xf32, #tpu.memory_space<vmem>>, vector<1x32xf32>
    %c275 = arith.constant 275 : index
    %c0_111 = arith.constant 0 : index
    %331 = vector.load %arg1[%c275, %c0_111] : memref<808x128xf32, #tpu.memory_space<vmem>>, vector<1x32xf32>
    %cst_112 = arith.constant dense<0.000000e+00> : vector<16xf32>
    %332 = vector.multi_reduction <add>, %329, %cst_112 [1] : vector<16x32xf32> to vector<16xf32>
    %333 = vector.shape_cast %332 : vector<16xf32> to vector<16x1xf32>
    %cst_113 = arith.constant 3.200000e+01 : f32
    %334 = vector.broadcast %cst_113 : f32 to vector<16x1xf32>
    %335 = arith.divf %333, %334 : vector<16x1xf32>
    %336 = vector.broadcast %335 : vector<16x1xf32> to vector<16x32xf32>
    %337 = arith.subf %329, %336 : vector<16x32xf32>
    %338 = arith.mulf %337, %337 : vector<16x32xf32>
    %cst_114 = arith.constant dense<0.000000e+00> : vector<16xf32>
    %339 = vector.multi_reduction <add>, %338, %cst_114 [1] : vector<16x32xf32> to vector<16xf32>
    %340 = vector.shape_cast %339 : vector<16xf32> to vector<16x1xf32>
    %cst_115 = arith.constant 0.0322580636 : f32
    %341 = vector.broadcast %cst_115 : f32 to vector<16x1xf32>
    %342 = arith.mulf %340, %341 : vector<16x1xf32>
    %343 = vector.broadcast %330 : vector<1x32xf32> to vector<16x32xf32>
    %344 = arith.mulf %343, %337 : vector<16x32xf32>
    %345 = math.sqrt %342 : vector<16x1xf32>
    %cst_116 = arith.constant 9.99999997E-7 : f32
    %346 = vector.broadcast %cst_116 : f32 to vector<16x1xf32>
    %347 = arith.addf %345, %346 : vector<16x1xf32>
    %348 = vector.broadcast %347 : vector<16x1xf32> to vector<16x32xf32>
    %349 = arith.divf %344, %348 : vector<16x32xf32>
    %350 = vector.broadcast %331 : vector<1x32xf32> to vector<16x32xf32>
    %351 = arith.addf %349, %350 : vector<16x32xf32>
    %c424 = arith.constant 424 : index
    %c0_117 = arith.constant 0 : index
    %352 = vector.load %arg1[%c424, %c0_117] : memref<808x128xf32, #tpu.memory_space<vmem>>, vector<32x64xf32>
    %c456 = arith.constant 456 : index
    %c0_118 = arith.constant 0 : index
    %353 = vector.load %arg1[%c456, %c0_118] : memref<808x128xf32, #tpu.memory_space<vmem>>, vector<1x64xf32>
    %c464 = arith.constant 464 : index
    %c0_119 = arith.constant 0 : index
    %354 = vector.load %arg1[%c464, %c0_119] : memref<808x128xf32, #tpu.memory_space<vmem>>, vector<64x32xf32>
    %c528 = arith.constant 528 : index
    %c0_120 = arith.constant 0 : index
    %355 = vector.load %arg1[%c528, %c0_120] : memref<808x128xf32, #tpu.memory_space<vmem>>, vector<1x32xf32>
    %cst_121 = arith.constant dense<0.000000e+00> : vector<16x64xf32>
    %356 = tpu.matmul %351, %352, %cst_121 {dimension_numbers = #tpu.dot_dimension_numbers<[1], [0], [0], [1], [0, 0, 1, 1], [], []>} : vector<16x32xf32>, vector<32x64xf32>, vector<16x64xf32> -> vector<16x64xf32>
    %357 = vector.broadcast %353 : vector<1x64xf32> to vector<16x64xf32>
    %358 = arith.addf %356, %357 : vector<16x64xf32>
    %cst_122 = arith.constant 0.000000e+00 : f32
    %359 = vector.broadcast %cst_122 : f32 to vector<16x64xf32>
    %360 = arith.maximumf %358, %359 : vector<16x64xf32>
    %cst_123 = arith.constant dense<0.000000e+00> : vector<16x32xf32>
    %361 = tpu.matmul %360, %354, %cst_123 {dimension_numbers = #tpu.dot_dimension_numbers<[1], [0], [0], [1], [0, 0, 1, 1], [], []>} : vector<16x64xf32>, vector<64x32xf32>, vector<16x32xf32> -> vector<16x32xf32>
    %362 = vector.broadcast %355 : vector<1x32xf32> to vector<16x32xf32>
    %363 = arith.addf %361, %362 : vector<16x32xf32>
    %364 = arith.addf %329, %363 : vector<16x32xf32>
    %c536 = arith.constant 536 : index
    %c0_124 = arith.constant 0 : index
    %365 = vector.load %arg1[%c536, %c0_124] : memref<808x128xf32, #tpu.memory_space<vmem>>, vector<1x32xf32>
    %c537 = arith.constant 537 : index
    %c0_125 = arith.constant 0 : index
    %366 = vector.load %arg1[%c537, %c0_125] : memref<808x128xf32, #tpu.memory_space<vmem>>, vector<1x32xf32>
    %cst_126 = arith.constant dense<0.000000e+00> : vector<16xf32>
    %367 = vector.multi_reduction <add>, %364, %cst_126 [1] : vector<16x32xf32> to vector<16xf32>
    %368 = vector.shape_cast %367 : vector<16xf32> to vector<16x1xf32>
    %cst_127 = arith.constant 3.200000e+01 : f32
    %369 = vector.broadcast %cst_127 : f32 to vector<16x1xf32>
    %370 = arith.divf %368, %369 : vector<16x1xf32>
    %371 = vector.broadcast %370 : vector<16x1xf32> to vector<16x32xf32>
    %372 = arith.subf %364, %371 : vector<16x32xf32>
    %373 = arith.mulf %372, %372 : vector<16x32xf32>
    %cst_128 = arith.constant dense<0.000000e+00> : vector<16xf32>
    %374 = vector.multi_reduction <add>, %373, %cst_128 [1] : vector<16x32xf32> to vector<16xf32>
    %375 = vector.shape_cast %374 : vector<16xf32> to vector<16x1xf32>
    %cst_129 = arith.constant 0.0322580636 : f32
    %376 = vector.broadcast %cst_129 : f32 to vector<16x1xf32>
    %377 = arith.mulf %375, %376 : vector<16x1xf32>
    %378 = vector.broadcast %365 : vector<1x32xf32> to vector<16x32xf32>
    %379 = arith.mulf %378, %372 : vector<16x32xf32>
    %380 = math.sqrt %377 : vector<16x1xf32>
    %cst_130 = arith.constant 9.99999997E-7 : f32
    %381 = vector.broadcast %cst_130 : f32 to vector<16x1xf32>
    %382 = arith.addf %380, %381 : vector<16x1xf32>
    %383 = vector.broadcast %382 : vector<16x1xf32> to vector<16x32xf32>
    %384 = arith.divf %379, %383 : vector<16x32xf32>
    %385 = vector.broadcast %366 : vector<1x32xf32> to vector<16x32xf32>
    %386 = arith.addf %384, %385 : vector<16x32xf32>
    %c0_131 = arith.constant 0 : index
    %c0_132 = arith.constant 0 : index
    %387 = vector.load %arg3[%c0_131, %c0_132] : memref<16x32xf32, #tpu.memory_space<vmem>>, vector<16x32xf32>
    tpu.vector_store %arg3[%c0_131, %c0_132], %386 {strides = array<i32>} : memref<16x32xf32, #tpu.memory_space<vmem>>, vector<16x32xf32>,
    %cst_133 = arith.constant 0.000000e+00 : f32
    %388 = vector.broadcast %cst_133 : f32 to vector<2x128xf32>
    %c800 = arith.constant 800 : index
    %c0_134 = arith.constant 0 : index
    %389 = vector.load %arg1[%c800, %c0_134] : memref<808x128xf32, #tpu.memory_space<vmem>>, vector<1x128xf32>
    %390 = vector.broadcast %389 : vector<1x128xf32> to vector<2x128xf32>
    %391 = arith.addf %388, %390 : vector<2x128xf32>
    %c0_135 = arith.constant 0 : index
    %c0_136 = arith.constant 0 : index
    %392 = tpu.strided_load %arg3[%c0_135, %c0_136] {strides = array<i32: 8, 1>} : memref<16x32xf32, #tpu.memory_space<vmem>>, vector<2x32xf32>
    %c544 = arith.constant 544 : index
    %c0_137 = arith.constant 0 : index
    %393 = vector.load %arg1[%c544, %c0_137] : memref<808x128xf32, #tpu.memory_space<vmem>>, vector<32x128xf32>
    %cst_138 = arith.constant dense<0.000000e+00> : vector<2x128xf32>
    %394 = tpu.matmul %392, %393, %cst_138 {dimension_numbers = #tpu.dot_dimension_numbers<[1], [0], [0], [1], [0, 0, 1, 1], [], []>} : vector<2x32xf32>, vector<32x128xf32>, vector<2x128xf32> -> vector<2x128xf32>
    %395 = arith.addf %391, %394 : vector<2x128xf32>
    %c1 = arith.constant 1 : index
    %c0_139 = arith.constant 0 : index
    %396 = tpu.strided_load %arg3[%c1, %c0_139] {strides = array<i32: 8, 1>} : memref<16x32xf32, #tpu.memory_space<vmem>>, vector<2x32xf32>
    %c576 = arith.constant 576 : index
    %c0_140 = arith.constant 0 : index
    %397 = vector.load %arg1[%c576, %c0_140] : memref<808x128xf32, #tpu.memory_space<vmem>>, vector<32x128xf32>
    %cst_141 = arith.constant dense<0.000000e+00> : vector<2x128xf32>
    %398 = tpu.matmul %396, %397, %cst_141 {dimension_numbers = #tpu.dot_dimension_numbers<[1], [0], [0], [1], [0, 0, 1, 1], [], []>} : vector<2x32xf32>, vector<32x128xf32>, vector<2x128xf32> -> vector<2x128xf32>
    %399 = arith.addf %395, %398 : vector<2x128xf32>
    %c2 = arith.constant 2 : index
    %c0_142 = arith.constant 0 : index
    %400 = tpu.strided_load %arg3[%c2, %c0_142] {strides = array<i32: 8, 1>} : memref<16x32xf32, #tpu.memory_space<vmem>>, vector<2x32xf32>
    %c608 = arith.constant 608 : index
    %c0_143 = arith.constant 0 : index
    %401 = vector.load %arg1[%c608, %c0_143] : memref<808x128xf32, #tpu.memory_space<vmem>>, vector<32x128xf32>
    %cst_144 = arith.constant dense<0.000000e+00> : vector<2x128xf32>
    %402 = tpu.matmul %400, %401, %cst_144 {dimension_numbers = #tpu.dot_dimension_numbers<[1], [0], [0], [1], [0, 0, 1, 1], [], []>} : vector<2x32xf32>, vector<32x128xf32>, vector<2x128xf32> -> vector<2x128xf32>
    %403 = arith.addf %399, %402 : vector<2x128xf32>
    %c3 = arith.constant 3 : index
    %c0_145 = arith.constant 0 : index
    %404 = tpu.strided_load %arg3[%c3, %c0_145] {strides = array<i32: 8, 1>} : memref<16x32xf32, #tpu.memory_space<vmem>>, vector<2x32xf32>
    %c640 = arith.constant 640 : index
    %c0_146 = arith.constant 0 : index
    %405 = vector.load %arg1[%c640, %c0_146] : memref<808x128xf32, #tpu.memory_space<vmem>>, vector<32x128xf32>
    %cst_147 = arith.constant dense<0.000000e+00> : vector<2x128xf32>
    %406 = tpu.matmul %404, %405, %cst_147 {dimension_numbers = #tpu.dot_dimension_numbers<[1], [0], [0], [1], [0, 0, 1, 1], [], []>} : vector<2x32xf32>, vector<32x128xf32>, vector<2x128xf32> -> vector<2x128xf32>
    %407 = arith.addf %403, %406 : vector<2x128xf32>
    %c4 = arith.constant 4 : index
    %c0_148 = arith.constant 0 : index
    %408 = tpu.strided_load %arg3[%c4, %c0_148] {strides = array<i32: 8, 1>} : memref<16x32xf32, #tpu.memory_space<vmem>>, vector<2x32xf32>
    %c672 = arith.constant 672 : index
    %c0_149 = arith.constant 0 : index
    %409 = vector.load %arg1[%c672, %c0_149] : memref<808x128xf32, #tpu.memory_space<vmem>>, vector<32x128xf32>
    %cst_150 = arith.constant dense<0.000000e+00> : vector<2x128xf32>
    %410 = tpu.matmul %408, %409, %cst_150 {dimension_numbers = #tpu.dot_dimension_numbers<[1], [0], [0], [1], [0, 0, 1, 1], [], []>} : vector<2x32xf32>, vector<32x128xf32>, vector<2x128xf32> -> vector<2x128xf32>
    %411 = arith.addf %407, %410 : vector<2x128xf32>
    %c5 = arith.constant 5 : index
    %c0_151 = arith.constant 0 : index
    %412 = tpu.strided_load %arg3[%c5, %c0_151] {strides = array<i32: 8, 1>} : memref<16x32xf32, #tpu.memory_space<vmem>>, vector<2x32xf32>
    %c704 = arith.constant 704 : index
    %c0_152 = arith.constant 0 : index
    %413 = vector.load %arg1[%c704, %c0_152] : memref<808x128xf32, #tpu.memory_space<vmem>>, vector<32x128xf32>
    %cst_153 = arith.constant dense<0.000000e+00> : vector<2x128xf32>
    %414 = tpu.matmul %412, %413, %cst_153 {dimension_numbers = #tpu.dot_dimension_numbers<[1], [0], [0], [1], [0, 0, 1, 1], [], []>} : vector<2x32xf32>, vector<32x128xf32>, vector<2x128xf32> -> vector<2x128xf32>
    %415 = arith.addf %411, %414 : vector<2x128xf32>
    %c6 = arith.constant 6 : index
    %c0_154 = arith.constant 0 : index
    %416 = tpu.strided_load %arg3[%c6, %c0_154] {strides = array<i32: 8, 1>} : memref<16x32xf32, #tpu.memory_space<vmem>>, vector<2x32xf32>
    %c736 = arith.constant 736 : index
    %c0_155 = arith.constant 0 : index
    %417 = vector.load %arg1[%c736, %c0_155] : memref<808x128xf32, #tpu.memory_space<vmem>>, vector<32x128xf32>
    %cst_156 = arith.constant dense<0.000000e+00> : vector<2x128xf32>
    %418 = tpu.matmul %416, %417, %cst_156 {dimension_numbers = #tpu.dot_dimension_numbers<[1], [0], [0], [1], [0, 0, 1, 1], [], []>} : vector<2x32xf32>, vector<32x128xf32>, vector<2x128xf32> -> vector<2x128xf32>
    %419 = arith.addf %415, %418 : vector<2x128xf32>
    %c7 = arith.constant 7 : index
    %c0_157 = arith.constant 0 : index
    %420 = tpu.strided_load %arg3[%c7, %c0_157] {strides = array<i32: 8, 1>} : memref<16x32xf32, #tpu.memory_space<vmem>>, vector<2x32xf32>
    %c768 = arith.constant 768 : index
    %c0_158 = arith.constant 0 : index
    %421 = vector.load %arg1[%c768, %c0_158] : memref<808x128xf32, #tpu.memory_space<vmem>>, vector<32x128xf32>
    %cst_159 = arith.constant dense<0.000000e+00> : vector<2x128xf32>
    %422 = tpu.matmul %420, %421, %cst_159 {dimension_numbers = #tpu.dot_dimension_numbers<[1], [0], [0], [1], [0, 0, 1, 1], [], []>} : vector<2x32xf32>, vector<32x128xf32>, vector<2x128xf32> -> vector<2x128xf32>
    %423 = arith.addf %419, %422 : vector<2x128xf32>
    %c0_160 = arith.constant 0 : index
    %c0_161 = arith.constant 0 : index
    %424 = vector.load %arg2[%c0_160, %c0_161] : memref<2x128xf32, #tpu.memory_space<vmem>>, vector<2x128xf32>
    tpu.vector_store %arg2[%c0_160, %c0_161], %423 {strides = array<i32>} : memref<2x128xf32, #tpu.memory_space<vmem>>, vector<2x128xf32>,
    return
  }
}

</mosaic_0001>

<llo_original>
// kernel: transformer_flow_forward.1
$region0: #{transformer_flow_forward.1}
  #allocation0 [shape = 'u32[]', space=smem, size = 0x4, offset = 0x4, fixed_abs, tag = 'smem constant byte address 0x4 - core index']
  #allocation1 [shape = 'u32[72,128]{1,0:T(1,128)}', space=vmem, size = 0x9000, scoped, tag = 'internal scratch']
  #allocation2 [shape = 'f32[16,32]{1,0:T(8,128)}', space=vmem, size = 0x2000, scoped, tag = 'scratch operand']
  %s0 = inlined_call_operand.hbm [shape: f32[16,32], index: 0, kind: input, shape index: {}]
  %s1 = inlined_call_operand.hbm [shape: f32[808,128], index: 1, kind: input, shape index: {}]
  %s2 = inlined_call_operand.vmem [shape: f32[2,128], index: 2, kind: output, shape index: {}]
  %s3 = sld [smem:[#allocation0]]
  $region26: #{transformer_flow_forward.1} parent=0
    _
  %s5 = ssub.s32 1, %s3
  %s6 = scalar_select 0, %s5, %s3
  $region1: #{transformer_flow_forward.1} parent=0
    #allocation3 [shape = 'u8[8192]{0}', space=vmem, size = 0x2000, scoped, tag = 'input window, operand 0, single buffered']
    #allocation4 [shape = 's32[1]{0}', space=sflag, size = 0x4, scoped, tag = 'scoped memory for transformer_flow_forward.1']
    #allocation5 [shape = 'u8[413696]{0}', space=vmem, size = 0x65000, scoped, tag = 'input window, operand 1, single buffered']
    #allocation6 [shape = 's32[1]{0}', space=sflag, size = 0x4, scoped, tag = 'scoped memory for transformer_flow_forward.1']
    %7 = vsyncpa [#allocation4], 0
    %8 = vsyncpa [#allocation6], 0
    // Predicated region
    $region2: #{transformer_flow_forward.1} parent=1 // pred_check
      _
    $region3: #{transformer_flow_forward.1} parent=1 // pred_check_branch
      %10 = sbr.rel (0) target = $region5
    $region4: #{transformer_flow_forward.1} parent=1 // pred_region
      %12 = vsyncadd [#allocation4], 0
      %s13 = sshll.u32 %s0, 4
      %s14 = int_to_ptr.hbm [resolvable:$true] %s13
      %s15 = sshll.u32 [#allocation3], 4
      %s16 = int_to_ptr.vmem [resolvable:$true] %s15
      %21 = dma.hbm_to_vmem [thread:$0]  %s14, 256, %s16, [#allocation4], 128, 128, 8
    $region5: #{transformer_flow_forward.1} parent=1 // pred_fallthru
      _
    // Predicated region
    $region6: #{transformer_flow_forward.1} parent=1 // pred_check
      _
    $region7: #{transformer_flow_forward.1} parent=1 // pred_check_branch
      %23 = sbr.rel (0) target = $region9
    $region8: #{transformer_flow_forward.1} parent=1 // pred_region
      %25 = vsyncadd [#allocation6], 0
      %s26 = sshll.u32 %s1, 4
      %s27 = int_to_ptr.hbm [resolvable:$true] %s26
      %s28 = sshll.u32 [#allocation5], 4
      %s29 = int_to_ptr.vmem [resolvable:$true] %s28
      %34 = dma.hbm_to_vmem [thread:$0]  %s27, 12928, %s29, [#allocation6], 128, 128, 8
    $region9: #{transformer_flow_forward.1} parent=1 // pred_fallthru
      _
    // Predicated region
    $region10: #{transformer_flow_forward.1} parent=1 // pred_check
      _
    $region11: #{transformer_flow_forward.1} parent=1 // pred_check_branch
      %36 = sbr.rel (0) target = $region13
    $region12: #{transformer_flow_forward.1} parent=1 // pred_region
      %38 = dma.done [#allocation4], 256
    $region13: #{transformer_flow_forward.1} parent=1 // pred_fallthru
      _
    // Predicated region
    $region14: #{transformer_flow_forward.1} parent=1 // pred_check
      _
    $region15: #{transformer_flow_forward.1} parent=1 // pred_check_branch
      %40 = sbr.rel (0) target = $region17
    $region16: #{transformer_flow_forward.1} parent=1 // pred_region
      %42 = dma.done [#allocation6], 12928
    $region17: #{transformer_flow_forward.1} parent=1 // pred_fallthru
      _
    %v43 = vlaneseq
    %v44 = vand.u32 %v43, 127
    %vm45 = vcmp.ge.s32.totalorder %v44, 0
    %vm46 = vcmp.lt.s32.totalorder %v44, 8
    %vm47 = vmand %vm45, %vm46
    %v48 = vsel %vm47, 1.0, 0.0
    %vm49 = vcmp.ge.s32.totalorder %v44, 8
    %vm50 = vcmp.lt.s32.totalorder %v44, 16
    %vm51 = vmand %vm49, %vm50
    %v52 = vsel %vm51, 1.0, 0.0
    %vm53 = vcmp.ge.s32.totalorder %v44, 16
    %vm54 = vcmp.lt.s32.totalorder %v44, 24
    %vm55 = vmand %vm53, %vm54
    %v56 = vsel %vm55, 1.0, 0.0
    %vm57 = vcmp.ge.s32.totalorder %v44, 24
    %vm58 = vcmp.lt.s32.totalorder %v44, 32
    %vm59 = vmand %vm57, %vm58
    %v60 = vsel %vm59, 1.0, 0.0
    %v61 = vlaneseq
    %v62 = vshrl.u32 %v61, 7
    %v63 = vadd.s32 %v62, 8
    %v64 = vshra.s32 %v62, 3
    %v65 = vshra.s32 %v63, 3
    %v66 = vshra.s32 %v44, 3
    %vm67 = vcmp.eq.s32.totalorder %v64, %v66
    %vm68 = vcmp.eq.s32.totalorder %v65, %v66
    %v69 = vsel %vm67, 0.0, -1e+30
    %v70 = vsel %vm68, 0.0, -1e+30
    %v71 = vld [vmem:[#allocation5] sm:$0xff]
    %v72 = vld [vmem:[#allocation3] sm:$0xff]
    %v73 = vld [vmem:[#allocation3 + $0x8] sm:$0xff]
    %v74 = vadd.f32 %v72, %v71
    %v75 = vadd.f32 %v73, %v71
    %v76 = vld [vmem:[#allocation5 + $0x8] sm:$0x1]
    %v77 = vld [vmem:[#allocation5 + $0x9] sm:$0x1]
    %vm78 = vcmask 261120
    %v79 = vsel %vm78, %v74, 0.0
    %80 = vadd.xlane.f32.xlu0 %v79
    %v81 = vpop.xlane.xlu0 %80
    %v82 = vsel %vm78, %v75, 0.0
    %83 = vadd.xlane.f32.xlu0 %v82
    %v84 = vpop.xlane.xlu0 %83
    %v85 = vrcp.pop 32.0
    %v86 = vmul.f32 32.0, %v85
    %v87 = vsub.f32 1.0, %v86
    %v88 = vmul.f32 %v85, %v87
    %v89 = vadd.f32 %v85, %v88
    %vm90 = vweird.f32 %v85
    %v91 = vsel %vm90, %v85, %v89
    %v92 = vmul.f32 %v81, %v91
    %v93 = vmul.f32 %v84, %v91
    %v94 = vsub.f32 %v74, %v92
    %v95 = vsub.f32 %v75, %v93
    %v96 = vmul.f32 %v94, %v94
    %v97 = vmul.f32 %v95, %v95
    %v98 = vsel %vm78, %v96, 0.0
    %99 = vadd.xlane.f32.xlu0 %v98
    %v100 = vpop.xlane.xlu0 %99
    %v101 = vsel %vm78, %v97, 0.0
    %102 = vadd.xlane.f32.xlu0 %v101
    %v103 = vpop.xlane.xlu0 %102
    %v104 = vmul.f32 %v100, 0.032258064
    %v105 = vmul.f32 %v103, 0.032258064
    %v106 = vperm.slane %v76, 0
    %v107 = vmul.f32 %v106, %v94
    %v108 = vmul.f32 %v106, %v95
    %v109 = vrsqrt.pop %v104
    %v110 = vmul.f32 %v109, %v104
    %v111 = vmul.f32 %v110, %v109
    %v112 = vmul.f32 0.5, %v111
    %v113 = vsub.f32 1.5, %v112
    %v114 = vmul.f32 %v109, %v113
    %v115 = vmul.f32 %v104, %v114
    %vm116 = vcmp.eq.f32.partialorder %v104, inf
    %v117 = vsel %vm116, %v104, %v115
    %vm118 = vcmp.eq.f32.partialorder %v104, 0.0
    %v119 = vand.u32 %v104, 2147483648
    %v120 = vsel %vm118, %v119, %v117
    %v121 = vrsqrt.pop %v105
    %v122 = vmul.f32 %v121, %v105
    %v123 = vmul.f32 %v122, %v121
    %v124 = vmul.f32 0.5, %v123
    %v125 = vsub.f32 1.5, %v124
    %v126 = vmul.f32 %v121, %v125
    %v127 = vmul.f32 %v105, %v126
    %vm128 = vcmp.eq.f32.partialorder %v105, inf
    %v129 = vsel %vm128, %v105, %v127
    %vm130 = vcmp.eq.f32.partialorder %v105, 0.0
    %v131 = vand.u32 %v105, 2147483648
    %v132 = vsel %vm130, %v131, %v129
    %v133 = vadd.f32 %v120, 1e-06
    %v134 = vadd.f32 %v132, 1e-06
    %v135 = vrcp.pop %v133
    %v136 = vmul.f32 %v133, %v135
    %v137 = vsub.f32 1.0, %v136
    %v138 = vmul.f32 %v135, %v137
    %v139 = vadd.f32 %v135, %v138
    %vm140 = vweird.f32 %v133
    %vm141 = vweird.f32 %v135
    %vm142 = vmor %vm140, %vm141
    %v143 = vsel %vm142, %v135, %v139
    %v144 = vand.u32 2147483647, %v133
    %vm145 = vcmp.eq.f32.partialorder %v144, 8.507059e+37
    %v146 = vand.u32 %v133, 2147483648
    %v147 = vor.u32 1.1754944e-38, %v146
    %v148 = vsel %vm145, %v147, %v143
    %v149 = vmul.f32 %v107, %v148
    %v150 = vrcp.pop %v134
    %v151 = vmul.f32 %v134, %v150
    %v152 = vsub.f32 1.0, %v151
    %v153 = vmul.f32 %v150, %v152
    %v154 = vadd.f32 %v150, %v153
    %vm155 = vweird.f32 %v134
    %vm156 = vweird.f32 %v150
    %vm157 = vmor %vm155, %vm156
    %v158 = vsel %vm157, %v150, %v154
    %v159 = vand.u32 2147483647, %v134
    %vm160 = vcmp.eq.f32.partialorder %v159, 8.507059e+37
    %v161 = vand.u32 %v134, 2147483648
    %v162 = vor.u32 1.1754944e-38, %v161
    %v163 = vsel %vm160, %v162, %v158
    %v164 = vmul.f32 %v108, %v163
    %v165 = vperm.slane %v77, 0
    %v166 = vadd.f32 %v149, %v165
    %v167 = vadd.f32 %v164, %v165
    %v168 = vld [vmem:[#allocation5 + $0x10] sm:$0xff]
    %v169 = vld [vmem:[#allocation5 + $0x18] sm:$0xff]
    %v170 = vld [vmem:[#allocation5 + $0x20] sm:$0xff]
    %v171 = vld [vmem:[#allocation5 + $0x28] sm:$0xff]
    %v172 = vld [vmem:[#allocation5 + $0x70] sm:$0x1]
    %v173 = vperm.slane %v172, 0
    %v175 = vsel %vm78, %v166, 0
    %v178 = vsel %vm78, %v167, 0
    %180 = vmatpush.msra.mxu0 0.0
    %181 = vmatpush.msra.mxu0 0.0
    %182 = vmatpush.msra.mxu0 0.0
    %183 = vmatpush.msra.mxu0 0.0
    %184 = vmatpush.msra.mxu0 0.0
    %185 = vmatpush.msra.mxu0 0.0
    %186 = vmatpush.msra.mxu0 0.0
    %187 = vmatpush.msra.mxu0 0.0
    %188 = vmatpush.msra.mxu0 0.0
    %189 = vmatpush.msra.mxu0 0.0
    %190 = vmatpush.msra.mxu0 0.0
    %191 = vmatpush.msra.mxu0 0.0
    %192 = vmatpush.msra.mxu0 %v171
    %193 = vmatpush.msra.mxu0 %v170
    %194 = vmatpush.msra.mxu0 %v169
    %195 = vmatpush.msra.mxu0 %v168
    %196 = vmatmul.f32.gmra.mxu0 %v175
    %v197 = vpop.f32.mrf.mxu0
    %v198 = vadd.f32 %v173, %v197
    %199 = vmatmul.f32.gmra.mxu0 %v178
    %v200 = vpop.f32.mrf.mxu0
    %v201 = vadd.f32 %v173, %v200
    %202 = vdwg.mxu0
    %v203 = vld [vmem:[#allocation5 + $0x30] sm:$0xff]
    %v204 = vld [vmem:[#allocation5 + $0x38] sm:$0xff]
    %v205 = vld [vmem:[#allocation5 + $0x40] sm:$0xff]
    %v206 = vld [vmem:[#allocation5 + $0x48] sm:$0xff]
    %v207 = vld [vmem:[#allocation5 + $0x71] sm:$0x1]
    %v208 = vperm.slane %v207, 0
    %209 = vmatpush.msra.mxu0 0.0
    %210 = vmatpush.msra.mxu0 0.0
    %211 = vmatpush.msra.mxu0 0.0
    %212 = vmatpush.msra.mxu0 0.0
    %213 = vmatpush.msra.mxu0 0.0
    %214 = vmatpush.msra.mxu0 0.0
    %215 = vmatpush.msra.mxu0 0.0
    %216 = vmatpush.msra.mxu0 0.0
    %217 = vmatpush.msra.mxu0 0.0
    %218 = vmatpush.msra.mxu0 0.0
    %219 = vmatpush.msra.mxu0 0.0
    %220 = vmatpush.msra.mxu0 0.0
    %221 = vmatpush.msra.mxu0 %v206
    %222 = vmatpush.msra.mxu0 %v205
    %223 = vmatpush.msra.mxu0 %v204
    %224 = vmatpush.msra.mxu0 %v203
    %225 = vmatmul.f32.gmra.mxu0 %v175
    %v226 = vpop.f32.mrf.mxu0
    %v227 = vadd.f32 %v208, %v226
    %228 = vmatmul.f32.gmra.mxu0 %v178
    %v229 = vpop.f32.mrf.mxu0
    %v230 = vadd.f32 %v208, %v229
    %231 = vdwg.mxu0
    %v232 = vld [vmem:[#allocation5 + $0x50] sm:$0xff]
    %v233 = vld [vmem:[#allocation5 + $0x58] sm:$0xff]
    %v234 = vld [vmem:[#allocation5 + $0x60] sm:$0xff]
    %v235 = vld [vmem:[#allocation5 + $0x68] sm:$0xff]
    %v236 = vld [vmem:[#allocation5 + $0x72] sm:$0x1]
    %v237 = vperm.slane %v236, 0
    %238 = vmatpush.msra.mxu0 0.0
    %239 = vmatpush.msra.mxu0 0.0
    %240 = vmatpush.msra.mxu0 0.0
    %241 = vmatpush.msra.mxu0 0.0
    %242 = vmatpush.msra.mxu0 0.0
    %243 = vmatpush.msra.mxu0 0.0
    %244 = vmatpush.msra.mxu0 0.0
    %245 = vmatpush.msra.mxu0 0.0
    %246 = vmatpush.msra.mxu0 0.0
    %247 = vmatpush.msra.mxu0 0.0
    %248 = vmatpush.msra.mxu0 0.0
    %249 = vmatpush.msra.mxu0 0.0
    %250 = vmatpush.msra.mxu0 %v235
    %251 = vmatpush.msra.mxu0 %v234
    %252 = vmatpush.msra.mxu0 %v233
    %253 = vmatpush.msra.mxu0 %v232
    %254 = vmatmul.f32.gmra.mxu0 %v175
    %v255 = vpop.f32.mrf.mxu0
    %v256 = vadd.f32 %v237, %v255
    %257 = vmatmul.f32.gmra.mxu0 %v178
    %v258 = vpop.f32.mrf.mxu0
    %v259 = vadd.f32 %v237, %v258
    %260 = vdwg.mxu0
    %v261 = vmul.f32 %v227, %v48
    %v262 = vmul.f32 %v230, %v48
    %v264 = vsel %vm78, %v198, 0
    %v267 = vsel %vm78, %v201, 0
    %v270 = vsel %vm78, %v261, 0
    %v273 = vsel %vm78, %v262, 0
    %275 = vmatpush.xpose.msra.mxu0 0.0
    %276 = vmatpush.xpose.msra.mxu0 0.0
    %277 = vmatpush.xpose.msra.mxu0 0.0
    %278 = vmatpush.xpose.msra.mxu0 0.0
    %279 = vmatpush.xpose.msra.mxu0 0.0
    %280 = vmatpush.xpose.msra.mxu0 0.0
    %281 = vmatpush.xpose.msra.mxu0 0.0
    %282 = vmatpush.xpose.msra.mxu0 0.0
    %283 = vmatpush.xpose.msra.mxu0 0.0
    %284 = vmatpush.xpose.msra.mxu0 0.0
    %285 = vmatpush.xpose.msra.mxu0 0.0
    %286 = vmatpush.xpose.msra.mxu0 0.0
    %287 = vmatpush.xpose.msra.mxu0 0.0
    %288 = vmatpush.xpose.msra.mxu0 0.0
    %289 = vmatpush.xpose.msra.mxu0 %v273
    %290 = vmatpush.xpose.msra.mxu0 %v270
    %291 = vmatmul.f32.gmra.mxu0 %v264
    %v292 = vpop.f32.mrf.mxu0
    %v293 = vadd.f32 0.0, %v292
    %294 = vmatmul.f32.gmra.mxu0 %v267
    %v295 = vpop.f32.mrf.mxu0
    %v296 = vadd.f32 0.0, %v295
    %297 = vdwg.mxu0
    %v298 = vmul.f32 %v293, 0.35355338
    %v299 = vmul.f32 %v296, 0.35355338
    %v300 = vadd.f32 %v298, %v69
    %v301 = vadd.f32 %v299, %v70
    %vm302 = vcmask 130048
    %v303 = vsel %vm302, %v300, -inf
    %304 = vmax.xlane.f32.xlu0 %v303
    %v305 = vpop.xlane.xlu0 %304
    %v306 = vsel %vm302, %v301, -inf
    %307 = vmax.xlane.f32.xlu0 %v306
    %v308 = vpop.xlane.xlu0 %307
    %v309 = vsub.f32 %v300, %v305
    %v310 = vsub.f32 %v301, %v308
    %v311 = vmul.f32 %v309, 1.442695
    %v312 = vpow.pop %v311
    %v313 = vmul.f32 %v310, 1.442695
    %v314 = vpow.pop %v313
    %v315 = vsel %vm302, %v312, 0.0
    %316 = vadd.xlane.f32.xlu0 %v315
    %v317 = vpop.xlane.xlu0 %316
    %v318 = vsel %vm302, %v314, 0.0
    %319 = vadd.xlane.f32.xlu0 %v318
    %v320 = vpop.xlane.xlu0 %319
    %v321 = vrcp.pop %v317
    %v322 = vrcp.pop %v320
    %v323 = vmul.f32 %v312, %v321
    %v324 = vmul.f32 %v314, %v322
    %v325 = vmul.f32 %v256, %v48
    %v326 = vmul.f32 %v259, %v48
    %v327 = vmul.f32 %v227, %v52
    %v328 = vmul.f32 %v230, %v52
    %v330 = vsel %vm78, %v327, 0
    %v333 = vsel %vm78, %v328, 0
    %335 = vmatpush.xpose.msra.mxu0 0.0
    %336 = vmatpush.xpose.msra.mxu0 0.0
    %337 = vmatpush.xpose.msra.mxu0 0.0
    %338 = vmatpush.xpose.msra.mxu0 0.0
    %339 = vmatpush.xpose.msra.mxu0 0.0
    %340 = vmatpush.xpose.msra.mxu0 0.0
    %341 = vmatpush.xpose.msra.mxu0 0.0
    %342 = vmatpush.xpose.msra.mxu0 0.0
    %343 = vmatpush.xpose.msra.mxu0 0.0
    %344 = vmatpush.xpose.msra.mxu0 0.0
    %345 = vmatpush.xpose.msra.mxu0 0.0
    %346 = vmatpush.xpose.msra.mxu0 0.0
    %347 = vmatpush.xpose.msra.mxu0 0.0
    %348 = vmatpush.xpose.msra.mxu0 0.0
    %349 = vmatpush.xpose.msra.mxu0 %v333
    %350 = vmatpush.xpose.msra.mxu0 %v330
    %351 = vmatmul.f32.gmra.mxu0 %v264
    %v352 = vpop.f32.mrf.mxu0
    %v353 = vadd.f32 0.0, %v352
    %354 = vmatmul.f32.gmra.mxu0 %v267
    %v355 = vpop.f32.mrf.mxu0
    %v356 = vadd.f32 0.0, %v355
    %357 = vdwg.mxu0
    %v358 = vmul.f32 %v353, 0.35355338
    %v359 = vmul.f32 %v356, 0.35355338
    %v360 = vadd.f32 %v358, %v69
    %v361 = vadd.f32 %v359, %v70
    %v362 = vsel %vm302, %v360, -inf
    %363 = vmax.xlane.f32.xlu0 %v362
    %v364 = vpop.xlane.xlu0 %363
    %v365 = vsel %vm302, %v361, -inf
    %366 = vmax.xlane.f32.xlu0 %v365
    %v367 = vpop.xlane.xlu0 %366
    %v368 = vsub.f32 %v360, %v364
    %v369 = vsub.f32 %v361, %v367
    %v370 = vmul.f32 %v368, 1.442695
    %v371 = vpow.pop %v370
    %v372 = vmul.f32 %v369, 1.442695
    %v373 = vpow.pop %v372
    %v374 = vsel %vm302, %v371, 0.0
    %375 = vadd.xlane.f32.xlu0 %v374
    %v376 = vpop.xlane.xlu0 %375
    %v377 = vsel %vm302, %v373, 0.0
    %378 = vadd.xlane.f32.xlu0 %v377
    %v379 = vpop.xlane.xlu0 %378
    %v380 = vrcp.pop %v376
    %v381 = vrcp.pop %v379
    %v382 = vmul.f32 %v371, %v380
    %v383 = vmul.f32 %v373, %v381
    %v384 = vmul.f32 %v256, %v52
    %v385 = vmul.f32 %v259, %v52
    %v387 = vsel %vm302, %v382, 0
    %v390 = vsel %vm302, %v383, 0
    %392 = vmatpush.msra.mxu0 0.0
    %393 = vmatpush.msra.mxu0 0.0
    %394 = vmatpush.msra.mxu0 0.0
    %395 = vmatpush.msra.mxu0 0.0
    %396 = vmatpush.msra.mxu0 0.0
    %397 = vmatpush.msra.mxu0 0.0
    %398 = vmatpush.msra.mxu0 0.0
    %399 = vmatpush.msra.mxu0 0.0
    %400 = vmatpush.msra.mxu0 0.0
    %401 = vmatpush.msra.mxu0 0.0
    %402 = vmatpush.msra.mxu0 0.0
    %403 = vmatpush.msra.mxu0 0.0
    %404 = vmatpush.msra.mxu0 0.0
    %405 = vmatpush.msra.mxu0 0.0
    %406 = vmatpush.msra.mxu0 %v385
    %407 = vmatpush.msra.mxu0 %v384
    %408 = vmatmul.f32.gmra.mxu0 %v387
    %v409 = vpop.f32.mrf.mxu0
    %v410 = vadd.f32 0.0, %v409
    %411 = vmatmul.f32.gmra.mxu0 %v390
    %v412 = vpop.f32.mrf.mxu0
    %v413 = vadd.f32 0.0, %v412
    %414 = vdwg.mxu0
    %v416 = vsel %vm302, %v323, 0
    %v419 = vsel %vm302, %v324, 0
    %421 = vmatpush.msra.mxu0 0.0
    %422 = vmatpush.msra.mxu0 0.0
    %423 = vmatpush.msra.mxu0 0.0
    %424 = vmatpush.msra.mxu0 0.0
    %425 = vmatpush.msra.mxu0 0.0
    %426 = vmatpush.msra.mxu0 0.0
    %427 = vmatpush.msra.mxu0 0.0
    %428 = vmatpush.msra.mxu0 0.0
    %429 = vmatpush.msra.mxu0 0.0
    %430 = vmatpush.msra.mxu0 0.0
    %431 = vmatpush.msra.mxu0 0.0
    %432 = vmatpush.msra.mxu0 0.0
    %433 = vmatpush.msra.mxu0 0.0
    %434 = vmatpush.msra.mxu0 0.0
    %435 = vmatpush.msra.mxu0 %v326
    %436 = vmatpush.msra.mxu0 %v325
    %437 = vmatmul.f32.gmra.mxu0 %v416
    %v438 = vpop.f32.mrf.mxu0
    %v439 = vadd.f32 %v410, %v438
    %440 = vmatmul.f32.gmra.mxu0 %v419
    %v441 = vpop.f32.mrf.mxu0
    %v442 = vadd.f32 %v413, %v441
    %443 = vdwg.mxu0
    %v444 = vmul.f32 %v227, %v56
    %v445 = vmul.f32 %v230, %v56
    %v447 = vsel %vm78, %v444, 0
    %v450 = vsel %vm78, %v445, 0
    %452 = vmatpush.xpose.msra.mxu0 0.0
    %453 = vmatpush.xpose.msra.mxu0 0.0
    %454 = vmatpush.xpose.msra.mxu0 0.0
    %455 = vmatpush.xpose.msra.mxu0 0.0
    %456 = vmatpush.xpose.msra.mxu0 0.0
    %457 = vmatpush.xpose.msra.mxu0 0.0
    %458 = vmatpush.xpose.msra.mxu0 0.0
    %459 = vmatpush.xpose.msra.mxu0 0.0
    %460 = vmatpush.xpose.msra.mxu0 0.0
    %461 = vmatpush.xpose.msra.mxu0 0.0
    %462 = vmatpush.xpose.msra.mxu0 0.0
    %463 = vmatpush.xpose.msra.mxu0 0.0
    %464 = vmatpush.xpose.msra.mxu0 0.0
    %465 = vmatpush.xpose.msra.mxu0 0.0
    %466 = vmatpush.xpose.msra.mxu0 %v450
    %467 = vmatpush.xpose.msra.mxu0 %v447
    %468 = vmatmul.f32.gmra.mxu0 %v264
    %v469 = vpop.f32.mrf.mxu0
    %v470 = vadd.f32 0.0, %v469
    %471 = vmatmul.f32.gmra.mxu0 %v267
    %v472 = vpop.f32.mrf.mxu0
    %v473 = vadd.f32 0.0, %v472
    %474 = vdwg.mxu0
    %v475 = vmul.f32 %v470, 0.35355338
    %v476 = vmul.f32 %v473, 0.35355338
    %v477 = vadd.f32 %v475, %v69
    %v478 = vadd.f32 %v476, %v70
    %v479 = vsel %vm302, %v477, -inf
    %480 = vmax.xlane.f32.xlu0 %v479
    %v481 = vpop.xlane.xlu0 %480
    %v482 = vsel %vm302, %v478, -inf
    %483 = vmax.xlane.f32.xlu0 %v482
    %v484 = vpop.xlane.xlu0 %483
    %v485 = vsub.f32 %v477, %v481
    %v486 = vsub.f32 %v478, %v484
    %v487 = vmul.f32 %v485, 1.442695
    %v488 = vpow.pop %v487
    %v489 = vmul.f32 %v486, 1.442695
    %v490 = vpow.pop %v489
    %v491 = vsel %vm302, %v488, 0.0
    %492 = vadd.xlane.f32.xlu0 %v491
    %v493 = vpop.xlane.xlu0 %492
    %v494 = vsel %vm302, %v490, 0.0
    %495 = vadd.xlane.f32.xlu0 %v494
    %v496 = vpop.xlane.xlu0 %495
    %v497 = vrcp.pop %v493
    %v498 = vrcp.pop %v496
    %v499 = vmul.f32 %v488, %v497
    %v500 = vmul.f32 %v490, %v498
    %v501 = vmul.f32 %v256, %v56
    %v502 = vmul.f32 %v259, %v56
    %v504 = vsel %vm302, %v499, 0
    %v507 = vsel %vm302, %v500, 0
    %509 = vmatpush.msra.mxu0 0.0
    %510 = vmatpush.msra.mxu0 0.0
    %511 = vmatpush.msra.mxu0 0.0
    %512 = vmatpush.msra.mxu0 0.0
    %513 = vmatpush.msra.mxu0 0.0
    %514 = vmatpush.msra.mxu0 0.0
    %515 = vmatpush.msra.mxu0 0.0
    %516 = vmatpush.msra.mxu0 0.0
    %517 = vmatpush.msra.mxu0 0.0
    %518 = vmatpush.msra.mxu0 0.0
    %519 = vmatpush.msra.mxu0 0.0
    %520 = vmatpush.msra.mxu0 0.0
    %521 = vmatpush.msra.mxu0 0.0
    %522 = vmatpush.msra.mxu0 0.0
    %523 = vmatpush.msra.mxu0 %v502
    %524 = vmatpush.msra.mxu0 %v501
    %525 = vmatmul.f32.gmra.mxu0 %v504
    %v526 = vpop.f32.mrf.mxu0
    %v527 = vadd.f32 0.0, %v526
    %528 = vmatmul.f32.gmra.mxu0 %v507
    %v529 = vpop.f32.mrf.mxu0
    %v530 = vadd.f32 0.0, %v529
    %531 = vdwg.mxu0
    %v532 = vadd.f32 %v439, %v527
    %v533 = vadd.f32 %v442, %v530
    %v534 = vmul.f32 %v227, %v60
    %v535 = vmul.f32 %v230, %v60
    %v537 = vsel %vm78, %v534, 0
    %v540 = vsel %vm78, %v535, 0
    %542 = vmatpush.xpose.msra.mxu0 0.0
    %543 = vmatpush.xpose.msra.mxu0 0.0
    %544 = vmatpush.xpose.msra.mxu0 0.0
    %545 = vmatpush.xpose.msra.mxu0 0.0
    %546 = vmatpush.xpose.msra.mxu0 0.0
    %547 = vmatpush.xpose.msra.mxu0 0.0
    %548 = vmatpush.xpose.msra.mxu0 0.0
    %549 = vmatpush.xpose.msra.mxu0 0.0
    %550 = vmatpush.xpose.msra.mxu0 0.0
    %551 = vmatpush.xpose.msra.mxu0 0.0
    %552 = vmatpush.xpose.msra.mxu0 0.0
    %553 = vmatpush.xpose.msra.mxu0 0.0
    %554 = vmatpush.xpose.msra.mxu0 0.0
    %555 = vmatpush.xpose.msra.mxu0 0.0
    %556 = vmatpush.xpose.msra.mxu0 %v540
    %557 = vmatpush.xpose.msra.mxu0 %v537
    %558 = vmatmul.f32.gmra.mxu0 %v264
    %v559 = vpop.f32.mrf.mxu0
    %v560 = vadd.f32 0.0, %v559
    %561 = vmatmul.f32.gmra.mxu0 %v267
    %v562 = vpop.f32.mrf.mxu0
    %v563 = vadd.f32 0.0, %v562
    %564 = vdwg.mxu0
    %v565 = vmul.f32 %v560, 0.35355338
    %v566 = vmul.f32 %v563, 0.35355338
    %v567 = vadd.f32 %v565, %v69
    %v568 = vadd.f32 %v566, %v70
    %v569 = vsel %vm302, %v567, -inf
    %570 = vmax.xlane.f32.xlu0 %v569
    %v571 = vpop.xlane.xlu0 %570
    %v572 = vsel %vm302, %v568, -inf
    %573 = vmax.xlane.f32.xlu0 %v572
    %v574 = vpop.xlane.xlu0 %573
    %v575 = vsub.f32 %v567, %v571
    %v576 = vsub.f32 %v568, %v574
    %v577 = vmul.f32 %v575, 1.442695
    %v578 = vpow.pop %v577
    %v579 = vmul.f32 %v576, 1.442695
    %v580 = vpow.pop %v579
    %v581 = vsel %vm302, %v578, 0.0
    %582 = vadd.xlane.f32.xlu0 %v581
    %v583 = vpop.xlane.xlu0 %582
    %v584 = vsel %vm302, %v580, 0.0
    %585 = vadd.xlane.f32.xlu0 %v584
    %v586 = vpop.xlane.xlu0 %585
    %v587 = vrcp.pop %v583
    %v588 = vrcp.pop %v586
    %v589 = vmul.f32 %v578, %v587
    %v590 = vmul.f32 %v580, %v588
    %v591 = vmul.f32 %v256, %v60
    %v592 = vmul.f32 %v259, %v60
    %v594 = vsel %vm302, %v589, 0
    %v597 = vsel %vm302, %v590, 0
    %599 = vmatpush.msra.mxu0 0.0
    %600 = vmatpush.msra.mxu0 0.0
    %601 = vmatpush.msra.mxu0 0.0
    %602 = vmatpush.msra.mxu0 0.0
    %603 = vmatpush.msra.mxu0 0.0
    %604 = vmatpush.msra.mxu0 0.0
    %605 = vmatpush.msra.mxu0 0.0
    %606 = vmatpush.msra.mxu0 0.0
    %607 = vmatpush.msra.mxu0 0.0
    %608 = vmatpush.msra.mxu0 0.0
    %609 = vmatpush.msra.mxu0 0.0
    %610 = vmatpush.msra.mxu0 0.0
    %611 = vmatpush.msra.mxu0 0.0
    %612 = vmatpush.msra.mxu0 0.0
    %613 = vmatpush.msra.mxu0 %v592
    %614 = vmatpush.msra.mxu0 %v591
    %615 = vmatmul.f32.gmra.mxu0 %v594
    %v616 = vpop.f32.mrf.mxu0
    %v617 = vadd.f32 0.0, %v616
    %618 = vmatmul.f32.gmra.mxu0 %v597
    %v619 = vpop.f32.mrf.mxu0
    %v620 = vadd.f32 0.0, %v619
    %621 = vdwg.mxu0
    %v622 = vadd.f32 %v532, %v617
    %v623 = vadd.f32 %v533, %v620
    %v624 = vld [vmem:[#allocation5 + $0x78] sm:$0xff]
    %v625 = vld [vmem:[#allocation5 + $0x80] sm:$0xff]
    %v626 = vld [vmem:[#allocation5 + $0x88] sm:$0xff]
    %v627 = vld [vmem:[#allocation5 + $0x90] sm:$0xff]
    %v628 = vld [vmem:[#allocation5 + $0x98] sm:$0x1]
    %v629 = vperm.slane %v628, 0
    %v631 = vsel %vm78, %v622, 0
    %v634 = vsel %vm78, %v623, 0
    %636 = vmatpush.msra.mxu0 0.0
    %637 = vmatpush.msra.mxu0 0.0
    %638 = vmatpush.msra.mxu0 0.0
    %639 = vmatpush.msra.mxu0 0.0
    %640 = vmatpush.msra.mxu0 0.0
    %641 = vmatpush.msra.mxu0 0.0
    %642 = vmatpush.msra.mxu0 0.0
    %643 = vmatpush.msra.mxu0 0.0
    %644 = vmatpush.msra.mxu0 0.0
    %645 = vmatpush.msra.mxu0 0.0
    %646 = vmatpush.msra.mxu0 0.0
    %647 = vmatpush.msra.mxu0 0.0
    %648 = vmatpush.msra.mxu0 %v627
    %649 = vmatpush.msra.mxu0 %v626
    %650 = vmatpush.msra.mxu0 %v625
    %651 = vmatpush.msra.mxu0 %v624
    %652 = vmatmul.f32.gmra.mxu0 %v631
    %v653 = vpop.f32.mrf.mxu0
    %v654 = vadd.f32 %v629, %v653
    %655 = vmatmul.f32.gmra.mxu0 %v634
    %v656 = vpop.f32.mrf.mxu0
    %v657 = vadd.f32 %v629, %v656
    %658 = vdwg.mxu0
    %v659 = vadd.f32 %v74, %v654
    %v660 = vadd.f32 %v75, %v657
    %v661 = vld [vmem:[#allocation5 + $0xa] sm:$0x1]
    %v662 = vld [vmem:[#allocation5 + $0xb] sm:$0x1]
    %v663 = vsel %vm78, %v659, 0.0
    %664 = vadd.xlane.f32.xlu0 %v663
    %v665 = vpop.xlane.xlu0 %664
    %v666 = vsel %vm78, %v660, 0.0
    %667 = vadd.xlane.f32.xlu0 %v666
    %v668 = vpop.xlane.xlu0 %667
    %v669 = vmul.f32 %v665, %v91
    %v670 = vmul.f32 %v668, %v91
    %v671 = vsub.f32 %v659, %v669
    %v672 = vsub.f32 %v660, %v670
    %v673 = vmul.f32 %v671, %v671
    %v674 = vmul.f32 %v672, %v672
    %v675 = vsel %vm78, %v673, 0.0
    %676 = vadd.xlane.f32.xlu0 %v675
    %v677 = vpop.xlane.xlu0 %676
    %v678 = vsel %vm78, %v674, 0.0
    %679 = vadd.xlane.f32.xlu0 %v678
    %v680 = vpop.xlane.xlu0 %679
    %v681 = vmul.f32 %v677, 0.032258064
    %v682 = vmul.f32 %v680, 0.032258064
    %v683 = vperm.slane %v661, 0
    %v684 = vmul.f32 %v683, %v671
    %v685 = vmul.f32 %v683, %v672
    %v686 = vrsqrt.pop %v681
    %v687 = vmul.f32 %v686, %v681
    %v688 = vmul.f32 %v687, %v686
    %v689 = vmul.f32 0.5, %v688
    %v690 = vsub.f32 1.5, %v689
    %v691 = vmul.f32 %v686, %v690
    %v692 = vmul.f32 %v681, %v691
    %vm693 = vcmp.eq.f32.partialorder %v681, inf
    %v694 = vsel %vm693, %v681, %v692
    %vm695 = vcmp.eq.f32.partialorder %v681, 0.0
    %v696 = vand.u32 %v681, 2147483648
    %v697 = vsel %vm695, %v696, %v694
    %v698 = vrsqrt.pop %v682
    %v699 = vmul.f32 %v698, %v682
    %v700 = vmul.f32 %v699, %v698
    %v701 = vmul.f32 0.5, %v700
    %v702 = vsub.f32 1.5, %v701
    %v703 = vmul.f32 %v698, %v702
    %v704 = vmul.f32 %v682, %v703
    %vm705 = vcmp.eq.f32.partialorder %v682, inf
    %v706 = vsel %vm705, %v682, %v704
    %vm707 = vcmp.eq.f32.partialorder %v682, 0.0
    %v708 = vand.u32 %v682, 2147483648
    %v709 = vsel %vm707, %v708, %v706
    %v710 = vadd.f32 %v697, 1e-06
    %v711 = vadd.f32 %v709, 1e-06
    %v712 = vrcp.pop %v710
    %v713 = vmul.f32 %v710, %v712
    %v714 = vsub.f32 1.0, %v713
    %v715 = vmul.f32 %v712, %v714
    %v716 = vadd.f32 %v712, %v715
    %vm717 = vweird.f32 %v710
    %vm718 = vweird.f32 %v712
    %vm719 = vmor %vm717, %vm718
    %v720 = vsel %vm719, %v712, %v716
    %v721 = vand.u32 2147483647, %v710
    %vm722 = vcmp.eq.f32.partialorder %v721, 8.507059e+37
    %v723 = vand.u32 %v710, 2147483648
    %v724 = vor.u32 1.1754944e-38, %v723
    %v725 = vsel %vm722, %v724, %v720
    %v726 = vmul.f32 %v684, %v725
    %v727 = vrcp.pop %v711
    %v728 = vmul.f32 %v711, %v727
    %v729 = vsub.f32 1.0, %v728
    %v730 = vmul.f32 %v727, %v729
    %v731 = vadd.f32 %v727, %v730
    %vm732 = vweird.f32 %v711
    %vm733 = vweird.f32 %v727
    %vm734 = vmor %vm732, %vm733
    %v735 = vsel %vm734, %v727, %v731
    %v736 = vand.u32 2147483647, %v711
    %vm737 = vcmp.eq.f32.partialorder %v736, 8.507059e+37
    %v738 = vand.u32 %v711, 2147483648
    %v739 = vor.u32 1.1754944e-38, %v738
    %v740 = vsel %vm737, %v739, %v735
    %v741 = vmul.f32 %v685, %v740
    %v742 = vperm.slane %v662, 0
    %v743 = vadd.f32 %v726, %v742
    %v744 = vadd.f32 %v741, %v742
    %v745 = vld [vmem:[#allocation5 + $0xa0] sm:$0xff]
    %v746 = vld [vmem:[#allocation5 + $0xa8] sm:$0xff]
    %v747 = vld [vmem:[#allocation5 + $0xb0] sm:$0xff]
    %v748 = vld [vmem:[#allocation5 + $0xb8] sm:$0xff]
    %v749 = vld [vmem:[#allocation5 + $0xc0] sm:$0x1]
    %v750 = vld [vmem:[#allocation5 + $0xc8] sm:$0xff]
    %v751 = vld [vmem:[#allocation5 + $0xd0] sm:$0xff]
    %v752 = vld [vmem:[#allocation5 + $0xd8] sm:$0xff]
    %v753 = vld [vmem:[#allocation5 + $0xe0] sm:$0xff]
    %v754 = vld [vmem:[#allocation5 + $0xe8] sm:$0xff]
    %v755 = vld [vmem:[#allocation5 + $0xf0] sm:$0xff]
    %v756 = vld [vmem:[#allocation5 + $0xf8] sm:$0xff]
    %v757 = vld [vmem:[#allocation5 + $0x100] sm:$0xff]
    %v758 = vld [vmem:[#allocation5 + $0x108] sm:$0x1]
    %v759 = vperm.slane %v749, 0
    %v761 = vsel %vm78, %v743, 0
    %v764 = vsel %vm78, %v744, 0
    %766 = vmatpush.msra.mxu0 0.0
    %767 = vmatpush.msra.mxu0 0.0
    %768 = vmatpush.msra.mxu0 0.0
    %769 = vmatpush.msra.mxu0 0.0
    %770 = vmatpush.msra.mxu0 0.0
    %771 = vmatpush.msra.mxu0 0.0
    %772 = vmatpush.msra.mxu0 0.0
    %773 = vmatpush.msra.mxu0 0.0
    %774 = vmatpush.msra.mxu0 0.0
    %775 = vmatpush.msra.mxu0 0.0
    %776 = vmatpush.msra.mxu0 0.0
    %777 = vmatpush.msra.mxu0 0.0
    %778 = vmatpush.msra.mxu0 %v748
    %779 = vmatpush.msra.mxu0 %v747
    %780 = vmatpush.msra.mxu0 %v746
    %781 = vmatpush.msra.mxu0 %v745
    %782 = vmatmul.f32.gmra.mxu0 %v761
    %v783 = vpop.f32.mrf.mxu0
    %v784 = vadd.f32 %v759, %v783
    %785 = vmatmul.f32.gmra.mxu0 %v764
    %v786 = vpop.f32.mrf.mxu0
    %v787 = vadd.f32 %v759, %v786
    %788 = vdwg.mxu0
    %v789 = vmax.f32 %v784, 0.0
    %v790 = vmax.f32 %v787, 0.0
    %v791 = vperm.slane %v758, 0
    %vm792 = vcmask 523264
    %v794 = vsel %vm792, %v789, 0
    %v797 = vsel %vm792, %v790, 0
    %799 = vmatpush.msra.mxu0 0.0
    %800 = vmatpush.msra.mxu0 0.0
    %801 = vmatpush.msra.mxu0 0.0
    %802 = vmatpush.msra.mxu0 0.0
    %803 = vmatpush.msra.mxu0 0.0
    %804 = vmatpush.msra.mxu0 0.0
    %805 = vmatpush.msra.mxu0 0.0
    %806 = vmatpush.msra.mxu0 0.0
    %807 = vmatpush.msra.mxu0 %v757
    %808 = vmatpush.msra.mxu0 %v756
    %809 = vmatpush.msra.mxu0 %v755
    %810 = vmatpush.msra.mxu0 %v754
    %811 = vmatpush.msra.mxu0 %v753
    %812 = vmatpush.msra.mxu0 %v752
    %813 = vmatpush.msra.mxu0 %v751
    %814 = vmatpush.msra.mxu0 %v750
    %815 = vmatmul.f32.gmra.mxu0 %v794
    %v816 = vpop.f32.mrf.mxu0
    %v817 = vadd.f32 %v791, %v816
    %818 = vmatmul.f32.gmra.mxu0 %v797
    %v819 = vpop.f32.mrf.mxu0
    %v820 = vadd.f32 %v791, %v819
    %821 = vdwg.mxu0
    %v822 = vadd.f32 %v659, %v817
    %v823 = vadd.f32 %v660, %v820
    %v824 = vld [vmem:[#allocation5 + $0x110] sm:$0x1]
    %v825 = vld [vmem:[#allocation5 + $0x111] sm:$0x1]
    %v826 = vsel %vm78, %v822, 0.0
    %827 = vadd.xlane.f32.xlu0 %v826
    %v828 = vpop.xlane.xlu0 %827
    %v829 = vsel %vm78, %v823, 0.0
    %830 = vadd.xlane.f32.xlu0 %v829
    %v831 = vpop.xlane.xlu0 %830
    %v832 = vmul.f32 %v828, %v91
    %v833 = vmul.f32 %v831, %v91
    %v834 = vsub.f32 %v822, %v832
    %v835 = vsub.f32 %v823, %v833
    %v836 = vmul.f32 %v834, %v834
    %v837 = vmul.f32 %v835, %v835
    %v838 = vsel %vm78, %v836, 0.0
    %839 = vadd.xlane.f32.xlu0 %v838
    %v840 = vpop.xlane.xlu0 %839
    %v841 = vsel %vm78, %v837, 0.0
    %842 = vadd.xlane.f32.xlu0 %v841
    %v843 = vpop.xlane.xlu0 %842
    %v844 = vmul.f32 %v840, 0.032258064
    %v845 = vmul.f32 %v843, 0.032258064
    %v846 = vperm.slane %v824, 0
    %v847 = vmul.f32 %v846, %v834
    %v848 = vmul.f32 %v846, %v835
    %v849 = vrsqrt.pop %v844
    %v850 = vmul.f32 %v849, %v844
    %v851 = vmul.f32 %v850, %v849
    %v852 = vmul.f32 0.5, %v851
    %v853 = vsub.f32 1.5, %v852
    %v854 = vmul.f32 %v849, %v853
    %v855 = vmul.f32 %v844, %v854
    %vm856 = vcmp.eq.f32.partialorder %v844, inf
    %v857 = vsel %vm856, %v844, %v855
    %vm858 = vcmp.eq.f32.partialorder %v844, 0.0
    %v859 = vand.u32 %v844, 2147483648
    %v860 = vsel %vm858, %v859, %v857
    %v861 = vrsqrt.pop %v845
    %v862 = vmul.f32 %v861, %v845
    %v863 = vmul.f32 %v862, %v861
    %v864 = vmul.f32 0.5, %v863
    %v865 = vsub.f32 1.5, %v864
    %v866 = vmul.f32 %v861, %v865
    %v867 = vmul.f32 %v845, %v866
    %vm868 = vcmp.eq.f32.partialorder %v845, inf
    %v869 = vsel %vm868, %v845, %v867
    %vm870 = vcmp.eq.f32.partialorder %v845, 0.0
    %v871 = vand.u32 %v845, 2147483648
    %v872 = vsel %vm870, %v871, %v869
    %v873 = vadd.f32 %v860, 1e-06
    %v874 = vadd.f32 %v872, 1e-06
    %v875 = vrcp.pop %v873
    %v876 = vmul.f32 %v873, %v875
    %v877 = vsub.f32 1.0, %v876
    %v878 = vmul.f32 %v875, %v877
    %v879 = vadd.f32 %v875, %v878
    %vm880 = vweird.f32 %v873
    %vm881 = vweird.f32 %v875
    %vm882 = vmor %vm880, %vm881
    %v883 = vsel %vm882, %v875, %v879
    %v884 = vand.u32 2147483647, %v873
    %vm885 = vcmp.eq.f32.partialorder %v884, 8.507059e+37
    %v886 = vand.u32 %v873, 2147483648
    %v887 = vor.u32 1.1754944e-38, %v886
    %v888 = vsel %vm885, %v887, %v883
    %v889 = vmul.f32 %v847, %v888
    %v890 = vrcp.pop %v874
    %v891 = vmul.f32 %v874, %v890
    %v892 = vsub.f32 1.0, %v891
    %v893 = vmul.f32 %v890, %v892
    %v894 = vadd.f32 %v890, %v893
    %vm895 = vweird.f32 %v874
    %vm896 = vweird.f32 %v890
    %vm897 = vmor %vm895, %vm896
    %v898 = vsel %vm897, %v890, %v894
    %v899 = vand.u32 2147483647, %v874
    %vm900 = vcmp.eq.f32.partialorder %v899, 8.507059e+37
    %v901 = vand.u32 %v874, 2147483648
    %v902 = vor.u32 1.1754944e-38, %v901
    %v903 = vsel %vm900, %v902, %v898
    %v904 = vmul.f32 %v848, %v903
    %v905 = vperm.slane %v825, 0
    %v906 = vadd.f32 %v889, %v905
    %v907 = vadd.f32 %v904, %v905
    %v908 = vld [vmem:[#allocation5 + $0x118] sm:$0xff]
    %v909 = vld [vmem:[#allocation5 + $0x120] sm:$0xff]
    %v910 = vld [vmem:[#allocation5 + $0x128] sm:$0xff]
    %v911 = vld [vmem:[#allocation5 + $0x130] sm:$0xff]
    %v912 = vld [vmem:[#allocation5 + $0x178] sm:$0x1]
    %v913 = vperm.slane %v912, 0
    %v915 = vsel %vm78, %v906, 0
    %v918 = vsel %vm78, %v907, 0
    %920 = vmatpush.msra.mxu0 0.0
    %921 = vmatpush.msra.mxu0 0.0
    %922 = vmatpush.msra.mxu0 0.0
    %923 = vmatpush.msra.mxu0 0.0
    %924 = vmatpush.msra.mxu0 0.0
    %925 = vmatpush.msra.mxu0 0.0
    %926 = vmatpush.msra.mxu0 0.0
    %927 = vmatpush.msra.mxu0 0.0
    %928 = vmatpush.msra.mxu0 0.0
    %929 = vmatpush.msra.mxu0 0.0
    %930 = vmatpush.msra.mxu0 0.0
    %931 = vmatpush.msra.mxu0 0.0
    %932 = vmatpush.msra.mxu0 %v911
    %933 = vmatpush.msra.mxu0 %v910
    %934 = vmatpush.msra.mxu0 %v909
    %935 = vmatpush.msra.mxu0 %v908
    %936 = vmatmul.f32.gmra.mxu0 %v915
    %v937 = vpop.f32.mrf.mxu0
    %v938 = vadd.f32 %v913, %v937
    %939 = vmatmul.f32.gmra.mxu0 %v918
    %v940 = vpop.f32.mrf.mxu0
    %v941 = vadd.f32 %v913, %v940
    %942 = vdwg.mxu0
    %v943 = vld [vmem:[#allocation5 + $0x138] sm:$0xff]
    %v944 = vld [vmem:[#allocation5 + $0x140] sm:$0xff]
    %v945 = vld [vmem:[#allocation5 + $0x148] sm:$0xff]
    %v946 = vld [vmem:[#allocation5 + $0x150] sm:$0xff]
    %v947 = vld [vmem:[#allocation5 + $0x179] sm:$0x1]
    %v948 = vperm.slane %v947, 0
    %949 = vmatpush.msra.mxu0 0.0
    %950 = vmatpush.msra.mxu0 0.0
    %951 = vmatpush.msra.mxu0 0.0
    %952 = vmatpush.msra.mxu0 0.0
    %953 = vmatpush.msra.mxu0 0.0
    %954 = vmatpush.msra.mxu0 0.0
    %955 = vmatpush.msra.mxu0 0.0
    %956 = vmatpush.msra.mxu0 0.0
    %957 = vmatpush.msra.mxu0 0.0
    %958 = vmatpush.msra.mxu0 0.0
    %959 = vmatpush.msra.mxu0 0.0
    %960 = vmatpush.msra.mxu0 0.0
    %961 = vmatpush.msra.mxu0 %v946
    %962 = vmatpush.msra.mxu0 %v945
    %963 = vmatpush.msra.mxu0 %v944
    %964 = vmatpush.msra.mxu0 %v943
    %965 = vmatmul.f32.gmra.mxu0 %v915
    %v966 = vpop.f32.mrf.mxu0
    %v967 = vadd.f32 %v948, %v966
    %968 = vmatmul.f32.gmra.mxu0 %v918
    %v969 = vpop.f32.mrf.mxu0
    %v970 = vadd.f32 %v948, %v969
    %971 = vdwg.mxu0
    %v972 = vld [vmem:[#allocation5 + $0x158] sm:$0xff]
    %v973 = vld [vmem:[#allocation5 + $0x160] sm:$0xff]
    %v974 = vld [vmem:[#allocation5 + $0x168] sm:$0xff]
    %v975 = vld [vmem:[#allocation5 + $0x170] sm:$0xff]
    %v976 = vld [vmem:[#allocation5 + $0x17a] sm:$0x1]
    %v977 = vperm.slane %v976, 0
    %978 = vmatpush.msra.mxu0 0.0
    %979 = vmatpush.msra.mxu0 0.0
    %980 = vmatpush.msra.mxu0 0.0
    %981 = vmatpush.msra.mxu0 0.0
    %982 = vmatpush.msra.mxu0 0.0
    %983 = vmatpush.msra.mxu0 0.0
    %984 = vmatpush.msra.mxu0 0.0
    %985 = vmatpush.msra.mxu0 0.0
    %986 = vmatpush.msra.mxu0 0.0
    %987 = vmatpush.msra.mxu0 0.0
    %988 = vmatpush.msra.mxu0 0.0
    %989 = vmatpush.msra.mxu0 0.0
    %990 = vmatpush.msra.mxu0 %v975
    %991 = vmatpush.msra.mxu0 %v974
    %992 = vmatpush.msra.mxu0 %v973
    %993 = vmatpush.msra.mxu0 %v972
    %994 = vmatmul.f32.gmra.mxu0 %v915
    %v995 = vpop.f32.mrf.mxu0
    %v996 = vadd.f32 %v977, %v995
    %997 = vmatmul.f32.gmra.mxu0 %v918
    %v998 = vpop.f32.mrf.mxu0
    %v999 = vadd.f32 %v977, %v998
    %1000 = vdwg.mxu0
    %v1001 = vmul.f32 %v967, %v48
    %v1002 = vmul.f32 %v970, %v48
    %v1004 = vsel %vm78, %v938, 0
    %v1007 = vsel %vm78, %v941, 0
    %v1010 = vsel %vm78, %v1001, 0
    %v1013 = vsel %vm78, %v1002, 0
    %1015 = vmatpush.xpose.msra.mxu0 0.0
    %1016 = vmatpush.xpose.msra.mxu0 0.0
    %1017 = vmatpush.xpose.msra.mxu0 0.0
    %1018 = vmatpush.xpose.msra.mxu0 0.0
    %1019 = vmatpush.xpose.msra.mxu0 0.0
    %1020 = vmatpush.xpose.msra.mxu0 0.0
    %1021 = vmatpush.xpose.msra.mxu0 0.0
    %1022 = vmatpush.xpose.msra.mxu0 0.0
    %1023 = vmatpush.xpose.msra.mxu0 0.0
    %1024 = vmatpush.xpose.msra.mxu0 0.0
    %1025 = vmatpush.xpose.msra.mxu0 0.0
    %1026 = vmatpush.xpose.msra.mxu0 0.0
    %1027 = vmatpush.xpose.msra.mxu0 0.0
    %1028 = vmatpush.xpose.msra.mxu0 0.0
    %1029 = vmatpush.xpose.msra.mxu0 %v1013
    %1030 = vmatpush.xpose.msra.mxu0 %v1010
    %1031 = vmatmul.f32.gmra.mxu0 %v1004
    %v1032 = vpop.f32.mrf.mxu0
    %v1033 = vadd.f32 0.0, %v1032
    %1034 = vmatmul.f32.gmra.mxu0 %v1007
    %v1035 = vpop.f32.mrf.mxu0
    %v1036 = vadd.f32 0.0, %v1035
    %1037 = vdwg.mxu0
    %v1038 = vmul.f32 %v1033, 0.35355338
    %v1039 = vmul.f32 %v1036, 0.35355338
    %v1040 = vadd.f32 %v1038, %v69
    %v1041 = vadd.f32 %v1039, %v70
    %v1042 = vsel %vm302, %v1040, -inf
    %1043 = vmax.xlane.f32.xlu0 %v1042
    %v1044 = vpop.xlane.xlu0 %1043
    %v1045 = vsel %vm302, %v1041, -inf
    %1046 = vmax.xlane.f32.xlu0 %v1045
    %v1047 = vpop.xlane.xlu0 %1046
    %v1048 = vsub.f32 %v1040, %v1044
    %v1049 = vsub.f32 %v1041, %v1047
    %v1050 = vmul.f32 %v1048, 1.442695
    %v1051 = vpow.pop %v1050
    %v1052 = vmul.f32 %v1049, 1.442695
    %v1053 = vpow.pop %v1052
    %v1054 = vsel %vm302, %v1051, 0.0
    %1055 = vadd.xlane.f32.xlu0 %v1054
    %v1056 = vpop.xlane.xlu0 %1055
    %v1057 = vsel %vm302, %v1053, 0.0
    %1058 = vadd.xlane.f32.xlu0 %v1057
    %v1059 = vpop.xlane.xlu0 %1058
    %v1060 = vrcp.pop %v1056
    %v1061 = vrcp.pop %v1059
    %v1062 = vmul.f32 %v1051, %v1060
    %v1063 = vmul.f32 %v1053, %v1061
    %v1064 = vmul.f32 %v996, %v48
    %v1065 = vmul.f32 %v999, %v48
    %v1066 = vmul.f32 %v967, %v52
    %v1067 = vmul.f32 %v970, %v52
    %v1069 = vsel %vm78, %v1066, 0
    %v1072 = vsel %vm78, %v1067, 0
    %1074 = vmatpush.xpose.msra.mxu0 0.0
    %1075 = vmatpush.xpose.msra.mxu0 0.0
    %1076 = vmatpush.xpose.msra.mxu0 0.0
    %1077 = vmatpush.xpose.msra.mxu0 0.0
    %1078 = vmatpush.xpose.msra.mxu0 0.0
    %1079 = vmatpush.xpose.msra.mxu0 0.0
    %1080 = vmatpush.xpose.msra.mxu0 0.0
    %1081 = vmatpush.xpose.msra.mxu0 0.0
    %1082 = vmatpush.xpose.msra.mxu0 0.0
    %1083 = vmatpush.xpose.msra.mxu0 0.0
    %1084 = vmatpush.xpose.msra.mxu0 0.0
    %1085 = vmatpush.xpose.msra.mxu0 0.0
    %1086 = vmatpush.xpose.msra.mxu0 0.0
    %1087 = vmatpush.xpose.msra.mxu0 0.0
    %1088 = vmatpush.xpose.msra.mxu0 %v1072
    %1089 = vmatpush.xpose.msra.mxu0 %v1069
    %1090 = vmatmul.f32.gmra.mxu0 %v1004
    %v1091 = vpop.f32.mrf.mxu0
    %v1092 = vadd.f32 0.0, %v1091
    %1093 = vmatmul.f32.gmra.mxu0 %v1007
    %v1094 = vpop.f32.mrf.mxu0
    %v1095 = vadd.f32 0.0, %v1094
    %1096 = vdwg.mxu0
    %v1097 = vmul.f32 %v1092, 0.35355338
    %v1098 = vmul.f32 %v1095, 0.35355338
    %v1099 = vadd.f32 %v1097, %v69
    %v1100 = vadd.f32 %v1098, %v70
    %v1101 = vsel %vm302, %v1099, -inf
    %1102 = vmax.xlane.f32.xlu0 %v1101
    %v1103 = vpop.xlane.xlu0 %1102
    %v1104 = vsel %vm302, %v1100, -inf
    %1105 = vmax.xlane.f32.xlu0 %v1104
    %v1106 = vpop.xlane.xlu0 %1105
    %v1107 = vsub.f32 %v1099, %v1103
    %v1108 = vsub.f32 %v1100, %v1106
    %v1109 = vmul.f32 %v1107, 1.442695
    %v1110 = vpow.pop %v1109
    %v1111 = vmul.f32 %v1108, 1.442695
    %v1112 = vpow.pop %v1111
    %v1113 = vsel %vm302, %v1110, 0.0
    %1114 = vadd.xlane.f32.xlu0 %v1113
    %v1115 = vpop.xlane.xlu0 %1114
    %v1116 = vsel %vm302, %v1112, 0.0
    %1117 = vadd.xlane.f32.xlu0 %v1116
    %v1118 = vpop.xlane.xlu0 %1117
    %v1119 = vrcp.pop %v1115
    %v1120 = vrcp.pop %v1118
    %v1121 = vmul.f32 %v1110, %v1119
    %v1122 = vmul.f32 %v1112, %v1120
    %v1123 = vmul.f32 %v996, %v52
    %v1124 = vmul.f32 %v999, %v52
    %v1126 = vsel %vm302, %v1121, 0
    %v1129 = vsel %vm302, %v1122, 0
    %1131 = vmatpush.msra.mxu0 0.0
    %1132 = vmatpush.msra.mxu0 0.0
    %1133 = vmatpush.msra.mxu0 0.0
    %1134 = vmatpush.msra.mxu0 0.0
    %1135 = vmatpush.msra.mxu0 0.0
    %1136 = vmatpush.msra.mxu0 0.0
    %1137 = vmatpush.msra.mxu0 0.0
    %1138 = vmatpush.msra.mxu0 0.0
    %1139 = vmatpush.msra.mxu0 0.0
    %1140 = vmatpush.msra.mxu0 0.0
    %1141 = vmatpush.msra.mxu0 0.0
    %1142 = vmatpush.msra.mxu0 0.0
    %1143 = vmatpush.msra.mxu0 0.0
    %1144 = vmatpush.msra.mxu0 0.0
    %1145 = vmatpush.msra.mxu0 %v1124
    %1146 = vmatpush.msra.mxu0 %v1123
    %1147 = vmatmul.f32.gmra.mxu0 %v1126
    %v1148 = vpop.f32.mrf.mxu0
    %v1149 = vadd.f32 0.0, %v1148
    %1150 = vmatmul.f32.gmra.mxu0 %v1129
    %v1151 = vpop.f32.mrf.mxu0
    %v1152 = vadd.f32 0.0, %v1151
    %1153 = vdwg.mxu0
    %v1155 = vsel %vm302, %v1062, 0
    %v1158 = vsel %vm302, %v1063, 0
    %1160 = vmatpush.msra.mxu0 0.0
    %1161 = vmatpush.msra.mxu0 0.0
    %1162 = vmatpush.msra.mxu0 0.0
    %1163 = vmatpush.msra.mxu0 0.0
    %1164 = vmatpush.msra.mxu0 0.0
    %1165 = vmatpush.msra.mxu0 0.0
    %1166 = vmatpush.msra.mxu0 0.0
    %1167 = vmatpush.msra.mxu0 0.0
    %1168 = vmatpush.msra.mxu0 0.0
    %1169 = vmatpush.msra.mxu0 0.0
    %1170 = vmatpush.msra.mxu0 0.0
    %1171 = vmatpush.msra.mxu0 0.0
    %1172 = vmatpush.msra.mxu0 0.0
    %1173 = vmatpush.msra.mxu0 0.0
    %1174 = vmatpush.msra.mxu0 %v1065
    %1175 = vmatpush.msra.mxu0 %v1064
    %1176 = vmatmul.f32.gmra.mxu0 %v1155
    %v1177 = vpop.f32.mrf.mxu0
    %v1178 = vadd.f32 %v1149, %v1177
    %1179 = vmatmul.f32.gmra.mxu0 %v1158
    %v1180 = vpop.f32.mrf.mxu0
    %v1181 = vadd.f32 %v1152, %v1180
    %1182 = vdwg.mxu0
    %v1183 = vmul.f32 %v967, %v56
    %v1184 = vmul.f32 %v970, %v56
    %v1186 = vsel %vm78, %v1183, 0
    %v1189 = vsel %vm78, %v1184, 0
    %1191 = vmatpush.xpose.msra.mxu0 0.0
    %1192 = vmatpush.xpose.msra.mxu0 0.0
    %1193 = vmatpush.xpose.msra.mxu0 0.0
    %1194 = vmatpush.xpose.msra.mxu0 0.0
    %1195 = vmatpush.xpose.msra.mxu0 0.0
    %1196 = vmatpush.xpose.msra.mxu0 0.0
    %1197 = vmatpush.xpose.msra.mxu0 0.0
    %1198 = vmatpush.xpose.msra.mxu0 0.0
    %1199 = vmatpush.xpose.msra.mxu0 0.0
    %1200 = vmatpush.xpose.msra.mxu0 0.0
    %1201 = vmatpush.xpose.msra.mxu0 0.0
    %1202 = vmatpush.xpose.msra.mxu0 0.0
    %1203 = vmatpush.xpose.msra.mxu0 0.0
    %1204 = vmatpush.xpose.msra.mxu0 0.0
    %1205 = vmatpush.xpose.msra.mxu0 %v1189
    %1206 = vmatpush.xpose.msra.mxu0 %v1186
    %1207 = vmatmul.f32.gmra.mxu0 %v1004
    %v1208 = vpop.f32.mrf.mxu0
    %v1209 = vadd.f32 0.0, %v1208
    %1210 = vmatmul.f32.gmra.mxu0 %v1007
    %v1211 = vpop.f32.mrf.mxu0
    %v1212 = vadd.f32 0.0, %v1211
    %1213 = vdwg.mxu0
    %v1214 = vmul.f32 %v1209, 0.35355338
    %v1215 = vmul.f32 %v1212, 0.35355338
    %v1216 = vadd.f32 %v1214, %v69
    %v1217 = vadd.f32 %v1215, %v70
    %v1218 = vsel %vm302, %v1216, -inf
    %1219 = vmax.xlane.f32.xlu0 %v1218
    %v1220 = vpop.xlane.xlu0 %1219
    %v1221 = vsel %vm302, %v1217, -inf
    %1222 = vmax.xlane.f32.xlu0 %v1221
    %v1223 = vpop.xlane.xlu0 %1222
    %v1224 = vsub.f32 %v1216, %v1220
    %v1225 = vsub.f32 %v1217, %v1223
    %v1226 = vmul.f32 %v1224, 1.442695
    %v1227 = vpow.pop %v1226
    %v1228 = vmul.f32 %v1225, 1.442695
    %v1229 = vpow.pop %v1228
    %v1230 = vsel %vm302, %v1227, 0.0
    %1231 = vadd.xlane.f32.xlu0 %v1230
    %v1232 = vpop.xlane.xlu0 %1231
    %v1233 = vsel %vm302, %v1229, 0.0
    %1234 = vadd.xlane.f32.xlu0 %v1233
    %v1235 = vpop.xlane.xlu0 %1234
    %v1236 = vrcp.pop %v1232
    %v1237 = vrcp.pop %v1235
    %v1238 = vmul.f32 %v1227, %v1236
    %v1239 = vmul.f32 %v1229, %v1237
    %v1240 = vmul.f32 %v996, %v56
    %v1241 = vmul.f32 %v999, %v56
    %v1243 = vsel %vm302, %v1238, 0
    %v1246 = vsel %vm302, %v1239, 0
    %1248 = vmatpush.msra.mxu0 0.0
    %1249 = vmatpush.msra.mxu0 0.0
    %1250 = vmatpush.msra.mxu0 0.0
    %1251 = vmatpush.msra.mxu0 0.0
    %1252 = vmatpush.msra.mxu0 0.0
    %1253 = vmatpush.msra.mxu0 0.0
    %1254 = vmatpush.msra.mxu0 0.0
    %1255 = vmatpush.msra.mxu0 0.0
    %1256 = vmatpush.msra.mxu0 0.0
    %1257 = vmatpush.msra.mxu0 0.0
    %1258 = vmatpush.msra.mxu0 0.0
    %1259 = vmatpush.msra.mxu0 0.0
    %1260 = vmatpush.msra.mxu0 0.0
    %1261 = vmatpush.msra.mxu0 0.0
    %1262 = vmatpush.msra.mxu0 %v1241
    %1263 = vmatpush.msra.mxu0 %v1240
    %1264 = vmatmul.f32.gmra.mxu0 %v1243
    %v1265 = vpop.f32.mrf.mxu0
    %v1266 = vadd.f32 0.0, %v1265
    %1267 = vmatmul.f32.gmra.mxu0 %v1246
    %v1268 = vpop.f32.mrf.mxu0
    %v1269 = vadd.f32 0.0, %v1268
    %1270 = vdwg.mxu0
    %v1271 = vadd.f32 %v1178, %v1266
    %v1272 = vadd.f32 %v1181, %v1269
    %v1273 = vmul.f32 %v967, %v60
    %v1274 = vmul.f32 %v970, %v60
    %v1276 = vsel %vm78, %v1273, 0
    %v1279 = vsel %vm78, %v1274, 0
    %1281 = vmatpush.xpose.msra.mxu0 0.0
    %1282 = vmatpush.xpose.msra.mxu0 0.0
    %1283 = vmatpush.xpose.msra.mxu0 0.0
    %1284 = vmatpush.xpose.msra.mxu0 0.0
    %1285 = vmatpush.xpose.msra.mxu0 0.0
    %1286 = vmatpush.xpose.msra.mxu0 0.0
    %1287 = vmatpush.xpose.msra.mxu0 0.0
    %1288 = vmatpush.xpose.msra.mxu0 0.0
    %1289 = vmatpush.xpose.msra.mxu0 0.0
    %1290 = vmatpush.xpose.msra.mxu0 0.0
    %1291 = vmatpush.xpose.msra.mxu0 0.0
    %1292 = vmatpush.xpose.msra.mxu0 0.0
    %1293 = vmatpush.xpose.msra.mxu0 0.0
    %1294 = vmatpush.xpose.msra.mxu0 0.0
    %1295 = vmatpush.xpose.msra.mxu0 %v1279
    %1296 = vmatpush.xpose.msra.mxu0 %v1276
    %1297 = vmatmul.f32.gmra.mxu0 %v1004
    %v1298 = vpop.f32.mrf.mxu0
    %v1299 = vadd.f32 0.0, %v1298
    %1300 = vmatmul.f32.gmra.mxu0 %v1007
    %v1301 = vpop.f32.mrf.mxu0
    %v1302 = vadd.f32 0.0, %v1301
    %1303 = vdwg.mxu0
    %v1304 = vmul.f32 %v1299, 0.35355338
    %v1305 = vmul.f32 %v1302, 0.35355338
    %v1306 = vadd.f32 %v1304, %v69
    %v1307 = vadd.f32 %v1305, %v70
    %v1308 = vsel %vm302, %v1306, -inf
    %1309 = vmax.xlane.f32.xlu0 %v1308
    %v1310 = vpop.xlane.xlu0 %1309
    %v1311 = vsel %vm302, %v1307, -inf
    %1312 = vmax.xlane.f32.xlu0 %v1311
    %v1313 = vpop.xlane.xlu0 %1312
    %v1314 = vsub.f32 %v1306, %v1310
    %v1315 = vsub.f32 %v1307, %v1313
    %v1316 = vmul.f32 %v1314, 1.442695
    %v1317 = vpow.pop %v1316
    %v1318 = vmul.f32 %v1315, 1.442695
    %v1319 = vpow.pop %v1318
    %v1320 = vsel %vm302, %v1317, 0.0
    %1321 = vadd.xlane.f32.xlu0 %v1320
    %v1322 = vpop.xlane.xlu0 %1321
    %v1323 = vsel %vm302, %v1319, 0.0
    %1324 = vadd.xlane.f32.xlu0 %v1323
    %v1325 = vpop.xlane.xlu0 %1324
    %v1326 = vrcp.pop %v1322
    %v1327 = vrcp.pop %v1325
    %v1328 = vmul.f32 %v1317, %v1326
    %v1329 = vmul.f32 %v1319, %v1327
    %v1330 = vmul.f32 %v996, %v60
    %v1331 = vmul.f32 %v999, %v60
    %v1333 = vsel %vm302, %v1328, 0
    %v1336 = vsel %vm302, %v1329, 0
    %1338 = vmatpush.msra.mxu0 0.0
    %1339 = vmatpush.msra.mxu0 0.0
    %1340 = vmatpush.msra.mxu0 0.0
    %1341 = vmatpush.msra.mxu0 0.0
    %1342 = vmatpush.msra.mxu0 0.0
    %1343 = vmatpush.msra.mxu0 0.0
    %1344 = vmatpush.msra.mxu0 0.0
    %1345 = vmatpush.msra.mxu0 0.0
    %1346 = vmatpush.msra.mxu0 0.0
    %1347 = vmatpush.msra.mxu0 0.0
    %1348 = vmatpush.msra.mxu0 0.0
    %1349 = vmatpush.msra.mxu0 0.0
    %1350 = vmatpush.msra.mxu0 0.0
    %1351 = vmatpush.msra.mxu0 0.0
    %1352 = vmatpush.msra.mxu0 %v1331
    %1353 = vmatpush.msra.mxu0 %v1330
    %1354 = vmatmul.f32.gmra.mxu0 %v1333
    %v1355 = vpop.f32.mrf.mxu0
    %v1356 = vadd.f32 0.0, %v1355
    %1357 = vmatmul.f32.gmra.mxu0 %v1336
    %v1358 = vpop.f32.mrf.mxu0
    %v1359 = vadd.f32 0.0, %v1358
    %1360 = vdwg.mxu0
    %v1361 = vadd.f32 %v1271, %v1356
    %v1362 = vadd.f32 %v1272, %v1359
    %v1363 = vld [vmem:[#allocation5 + $0x180] sm:$0xff]
    %v1364 = vld [vmem:[#allocation5 + $0x188] sm:$0xff]
    %v1365 = vld [vmem:[#allocation5 + $0x190] sm:$0xff]
    %v1366 = vld [vmem:[#allocation5 + $0x198] sm:$0xff]
    %v1367 = vld [vmem:[#allocation5 + $0x1a0] sm:$0x1]
    %v1368 = vperm.slane %v1367, 0
    %v1370 = vsel %vm78, %v1361, 0
    %v1373 = vsel %vm78, %v1362, 0
    %1375 = vmatpush.msra.mxu0 0.0
    %1376 = vmatpush.msra.mxu0 0.0
    %1377 = vmatpush.msra.mxu0 0.0
    %1378 = vmatpush.msra.mxu0 0.0
    %1379 = vmatpush.msra.mxu0 0.0
    %1380 = vmatpush.msra.mxu0 0.0
    %1381 = vmatpush.msra.mxu0 0.0
    %1382 = vmatpush.msra.mxu0 0.0
    %1383 = vmatpush.msra.mxu0 0.0
    %1384 = vmatpush.msra.mxu0 0.0
    %1385 = vmatpush.msra.mxu0 0.0
    %1386 = vmatpush.msra.mxu0 0.0
    %1387 = vmatpush.msra.mxu0 %v1366
    %1388 = vmatpush.msra.mxu0 %v1365
    %1389 = vmatpush.msra.mxu0 %v1364
    %1390 = vmatpush.msra.mxu0 %v1363
    %1391 = vmatmul.f32.gmra.mxu0 %v1370
    %v1392 = vpop.f32.mrf.mxu0
    %v1393 = vadd.f32 %v1368, %v1392
    %1394 = vmatmul.f32.gmra.mxu0 %v1373
    %v1395 = vpop.f32.mrf.mxu0
    %v1396 = vadd.f32 %v1368, %v1395
    %1397 = vdwg.mxu0
    %v1398 = vadd.f32 %v822, %v1393
    %v1399 = vadd.f32 %v823, %v1396
    %v1400 = vld [vmem:[#allocation5 + $0x112] sm:$0x1]
    %v1401 = vld [vmem:[#allocation5 + $0x113] sm:$0x1]
    %v1402 = vsel %vm78, %v1398, 0.0
    %1403 = vadd.xlane.f32.xlu0 %v1402
    %v1404 = vpop.xlane.xlu0 %1403
    %v1405 = vsel %vm78, %v1399, 0.0
    %1406 = vadd.xlane.f32.xlu0 %v1405
    %v1407 = vpop.xlane.xlu0 %1406
    %v1408 = vmul.f32 %v1404, %v91
    %v1409 = vmul.f32 %v1407, %v91
    %v1410 = vsub.f32 %v1398, %v1408
    %v1411 = vsub.f32 %v1399, %v1409
    %v1412 = vmul.f32 %v1410, %v1410
    %v1413 = vmul.f32 %v1411, %v1411
    %v1414 = vsel %vm78, %v1412, 0.0
    %1415 = vadd.xlane.f32.xlu0 %v1414
    %v1416 = vpop.xlane.xlu0 %1415
    %v1417 = vsel %vm78, %v1413, 0.0
    %1418 = vadd.xlane.f32.xlu0 %v1417
    %v1419 = vpop.xlane.xlu0 %1418
    %v1420 = vmul.f32 %v1416, 0.032258064
    %v1421 = vmul.f32 %v1419, 0.032258064
    %v1422 = vperm.slane %v1400, 0
    %v1423 = vmul.f32 %v1422, %v1410
    %v1424 = vmul.f32 %v1422, %v1411
    %v1425 = vrsqrt.pop %v1420
    %v1426 = vmul.f32 %v1425, %v1420
    %v1427 = vmul.f32 %v1426, %v1425
    %v1428 = vmul.f32 0.5, %v1427
    %v1429 = vsub.f32 1.5, %v1428
    %v1430 = vmul.f32 %v1425, %v1429
    %v1431 = vmul.f32 %v1420, %v1430
    %vm1432 = vcmp.eq.f32.partialorder %v1420, inf
    %v1433 = vsel %vm1432, %v1420, %v1431
    %vm1434 = vcmp.eq.f32.partialorder %v1420, 0.0
    %v1435 = vand.u32 %v1420, 2147483648
    %v1436 = vsel %vm1434, %v1435, %v1433
    %v1437 = vrsqrt.pop %v1421
    %v1438 = vmul.f32 %v1437, %v1421
    %v1439 = vmul.f32 %v1438, %v1437
    %v1440 = vmul.f32 0.5, %v1439
    %v1441 = vsub.f32 1.5, %v1440
    %v1442 = vmul.f32 %v1437, %v1441
    %v1443 = vmul.f32 %v1421, %v1442
    %vm1444 = vcmp.eq.f32.partialorder %v1421, inf
    %v1445 = vsel %vm1444, %v1421, %v1443
    %vm1446 = vcmp.eq.f32.partialorder %v1421, 0.0
    %v1447 = vand.u32 %v1421, 2147483648
    %v1448 = vsel %vm1446, %v1447, %v1445
    %v1449 = vadd.f32 %v1436, 1e-06
    %v1450 = vadd.f32 %v1448, 1e-06
    %v1451 = vrcp.pop %v1449
    %v1452 = vmul.f32 %v1449, %v1451
    %v1453 = vsub.f32 1.0, %v1452
    %v1454 = vmul.f32 %v1451, %v1453
    %v1455 = vadd.f32 %v1451, %v1454
    %vm1456 = vweird.f32 %v1449
    %vm1457 = vweird.f32 %v1451
    %vm1458 = vmor %vm1456, %vm1457
    %v1459 = vsel %vm1458, %v1451, %v1455
    %v1460 = vand.u32 2147483647, %v1449
    %vm1461 = vcmp.eq.f32.partialorder %v1460, 8.507059e+37
    %v1462 = vand.u32 %v1449, 2147483648
    %v1463 = vor.u32 1.1754944e-38, %v1462
    %v1464 = vsel %vm1461, %v1463, %v1459
    %v1465 = vmul.f32 %v1423, %v1464
    %v1466 = vrcp.pop %v1450
    %v1467 = vmul.f32 %v1450, %v1466
    %v1468 = vsub.f32 1.0, %v1467
    %v1469 = vmul.f32 %v1466, %v1468
    %v1470 = vadd.f32 %v1466, %v1469
    %vm1471 = vweird.f32 %v1450
    %vm1472 = vweird.f32 %v1466
    %vm1473 = vmor %vm1471, %vm1472
    %v1474 = vsel %vm1473, %v1466, %v1470
    %v1475 = vand.u32 2147483647, %v1450
    %vm1476 = vcmp.eq.f32.partialorder %v1475, 8.507059e+37
    %v1477 = vand.u32 %v1450, 2147483648
    %v1478 = vor.u32 1.1754944e-38, %v1477
    %v1479 = vsel %vm1476, %v1478, %v1474
    %v1480 = vmul.f32 %v1424, %v1479
    %v1481 = vperm.slane %v1401, 0
    %v1482 = vadd.f32 %v1465, %v1481
    %v1483 = vadd.f32 %v1480, %v1481
    %v1484 = vld [vmem:[#allocation5 + $0x1a8] sm:$0xff]
    %v1485 = vld [vmem:[#allocation5 + $0x1b0] sm:$0xff]
    %v1486 = vld [vmem:[#allocation5 + $0x1b8] sm:$0xff]
    %v1487 = vld [vmem:[#allocation5 + $0x1c0] sm:$0xff]
    %v1488 = vld [vmem:[#allocation5 + $0x1c8] sm:$0x1]
    %v1489 = vld [vmem:[#allocation5 + $0x1d0] sm:$0xff]
    %v1490 = vld [vmem:[#allocation5 + $0x1d8] sm:$0xff]
    %v1491 = vld [vmem:[#allocation5 + $0x1e0] sm:$0xff]
    %v1492 = vld [vmem:[#allocation5 + $0x1e8] sm:$0xff]
    %v1493 = vld [vmem:[#allocation5 + $0x1f0] sm:$0xff]
    %v1494 = vld [vmem:[#allocation5 + $0x1f8] sm:$0xff]
    %v1495 = vld [vmem:[#allocation5 + $0x200] sm:$0xff]
    %v1496 = vld [vmem:[#allocation5 + $0x208] sm:$0xff]
    %v1497 = vld [vmem:[#allocation5 + $0x210] sm:$0x1]
    %v1498 = vperm.slane %v1488, 0
    %v1500 = vsel %vm78, %v1482, 0
    %v1503 = vsel %vm78, %v1483, 0
    %1505 = vmatpush.msra.mxu0 0.0
    %1506 = vmatpush.msra.mxu0 0.0
    %1507 = vmatpush.msra.mxu0 0.0
    %1508 = vmatpush.msra.mxu0 0.0
    %1509 = vmatpush.msra.mxu0 0.0
    %1510 = vmatpush.msra.mxu0 0.0
    %1511 = vmatpush.msra.mxu0 0.0
    %1512 = vmatpush.msra.mxu0 0.0
    %1513 = vmatpush.msra.mxu0 0.0
    %1514 = vmatpush.msra.mxu0 0.0
    %1515 = vmatpush.msra.mxu0 0.0
    %1516 = vmatpush.msra.mxu0 0.0
    %1517 = vmatpush.msra.mxu0 %v1487
    %1518 = vmatpush.msra.mxu0 %v1486
    %1519 = vmatpush.msra.mxu0 %v1485
    %1520 = vmatpush.msra.mxu0 %v1484
    %1521 = vmatmul.f32.gmra.mxu0 %v1500
    %v1522 = vpop.f32.mrf.mxu0
    %v1523 = vadd.f32 %v1498, %v1522
    %1524 = vmatmul.f32.gmra.mxu0 %v1503
    %v1525 = vpop.f32.mrf.mxu0
    %v1526 = vadd.f32 %v1498, %v1525
    %1527 = vdwg.mxu0
    %v1528 = vmax.f32 %v1523, 0.0
    %v1529 = vmax.f32 %v1526, 0.0
    %v1530 = vperm.slane %v1497, 0
    %v1532 = vsel %vm792, %v1528, 0
    %v1535 = vsel %vm792, %v1529, 0
    %1537 = vmatpush.msra.mxu0 0.0
    %1538 = vmatpush.msra.mxu0 0.0
    %1539 = vmatpush.msra.mxu0 0.0
    %1540 = vmatpush.msra.mxu0 0.0
    %1541 = vmatpush.msra.mxu0 0.0
    %1542 = vmatpush.msra.mxu0 0.0
    %1543 = vmatpush.msra.mxu0 0.0
    %1544 = vmatpush.msra.mxu0 0.0
    %1545 = vmatpush.msra.mxu0 %v1496
    %1546 = vmatpush.msra.mxu0 %v1495
    %1547 = vmatpush.msra.mxu0 %v1494
    %1548 = vmatpush.msra.mxu0 %v1493
    %1549 = vmatpush.msra.mxu0 %v1492
    %1550 = vmatpush.msra.mxu0 %v1491
    %1551 = vmatpush.msra.mxu0 %v1490
    %1552 = vmatpush.msra.mxu0 %v1489
    %1553 = vmatmul.f32.gmra.mxu0 %v1532
    %v1554 = vpop.f32.mrf.mxu0
    %v1555 = vadd.f32 %v1530, %v1554
    %1556 = vmatmul.f32.gmra.mxu0 %v1535
    %v1557 = vpop.f32.mrf.mxu0
    %v1558 = vadd.f32 %v1530, %v1557
    %1559 = vdwg.mxu0
    %v1560 = vadd.f32 %v1398, %v1555
    %v1561 = vadd.f32 %v1399, %v1558
    %v1562 = vld [vmem:[#allocation5 + $0x218] sm:$0x1]
    %v1563 = vld [vmem:[#allocation5 + $0x219] sm:$0x1]
    %v1564 = vsel %vm78, %v1560, 0.0
    %1565 = vadd.xlane.f32.xlu0 %v1564
    %v1566 = vpop.xlane.xlu0 %1565
    %v1567 = vsel %vm78, %v1561, 0.0
    %1568 = vadd.xlane.f32.xlu0 %v1567
    %v1569 = vpop.xlane.xlu0 %1568
    %v1570 = vmul.f32 %v1566, %v91
    %v1571 = vmul.f32 %v1569, %v91
    %v1572 = vsub.f32 %v1560, %v1570
    %v1573 = vsub.f32 %v1561, %v1571
    %v1574 = vmul.f32 %v1572, %v1572
    %v1575 = vmul.f32 %v1573, %v1573
    %v1576 = vsel %vm78, %v1574, 0.0
    %1577 = vadd.xlane.f32.xlu0 %v1576
    %v1578 = vpop.xlane.xlu0 %1577
    %v1579 = vsel %vm78, %v1575, 0.0
    %1580 = vadd.xlane.f32.xlu0 %v1579
    %v1581 = vpop.xlane.xlu0 %1580
    %v1582 = vmul.f32 %v1578, 0.032258064
    %v1583 = vmul.f32 %v1581, 0.032258064
    %v1584 = vperm.slane %v1562, 0
    %v1585 = vmul.f32 %v1584, %v1572
    %v1586 = vmul.f32 %v1584, %v1573
    %v1587 = vrsqrt.pop %v1582
    %v1588 = vmul.f32 %v1587, %v1582
    %v1589 = vmul.f32 %v1588, %v1587
    %v1590 = vmul.f32 0.5, %v1589
    %v1591 = vsub.f32 1.5, %v1590
    %v1592 = vmul.f32 %v1587, %v1591
    %v1593 = vmul.f32 %v1582, %v1592
    %vm1594 = vcmp.eq.f32.partialorder %v1582, inf
    %v1595 = vsel %vm1594, %v1582, %v1593
    %vm1596 = vcmp.eq.f32.partialorder %v1582, 0.0
    %v1597 = vand.u32 %v1582, 2147483648
    %v1598 = vsel %vm1596, %v1597, %v1595
    %v1599 = vrsqrt.pop %v1583
    %v1600 = vmul.f32 %v1599, %v1583
    %v1601 = vmul.f32 %v1600, %v1599
    %v1602 = vmul.f32 0.5, %v1601
    %v1603 = vsub.f32 1.5, %v1602
    %v1604 = vmul.f32 %v1599, %v1603
    %v1605 = vmul.f32 %v1583, %v1604
    %vm1606 = vcmp.eq.f32.partialorder %v1583, inf
    %v1607 = vsel %vm1606, %v1583, %v1605
    %vm1608 = vcmp.eq.f32.partialorder %v1583, 0.0
    %v1609 = vand.u32 %v1583, 2147483648
    %v1610 = vsel %vm1608, %v1609, %v1607
    %v1611 = vadd.f32 %v1598, 1e-06
    %v1612 = vadd.f32 %v1610, 1e-06
    %v1613 = vrcp.pop %v1611
    %v1614 = vmul.f32 %v1611, %v1613
    %v1615 = vsub.f32 1.0, %v1614
    %v1616 = vmul.f32 %v1613, %v1615
    %v1617 = vadd.f32 %v1613, %v1616
    %vm1618 = vweird.f32 %v1611
    %vm1619 = vweird.f32 %v1613
    %vm1620 = vmor %vm1618, %vm1619
    %v1621 = vsel %vm1620, %v1613, %v1617
    %v1622 = vand.u32 2147483647, %v1611
    %vm1623 = vcmp.eq.f32.partialorder %v1622, 8.507059e+37
    %v1624 = vand.u32 %v1611, 2147483648
    %v1625 = vor.u32 1.1754944e-38, %v1624
    %v1626 = vsel %vm1623, %v1625, %v1621
    %v1627 = vmul.f32 %v1585, %v1626
    %v1628 = vrcp.pop %v1612
    %v1629 = vmul.f32 %v1612, %v1628
    %v1630 = vsub.f32 1.0, %v1629
    %v1631 = vmul.f32 %v1628, %v1630
    %v1632 = vadd.f32 %v1628, %v1631
    %vm1633 = vweird.f32 %v1612
    %vm1634 = vweird.f32 %v1628
    %vm1635 = vmor %vm1633, %vm1634
    %v1636 = vsel %vm1635, %v1628, %v1632
    %v1637 = vand.u32 2147483647, %v1612
    %vm1638 = vcmp.eq.f32.partialorder %v1637, 8.507059e+37
    %v1639 = vand.u32 %v1612, 2147483648
    %v1640 = vor.u32 1.1754944e-38, %v1639
    %v1641 = vsel %vm1638, %v1640, %v1636
    %v1642 = vmul.f32 %v1586, %v1641
    %v1643 = vperm.slane %v1563, 0
    %v1644 = vadd.f32 %v1627, %v1643
    %v1645 = vadd.f32 %v1642, %v1643
    %1646 = vst.msk [vmem:[#allocation2] sm:$0xff] %vm78, %v1644
    %1647 = vst.msk [vmem:[#allocation2 + $0x8] sm:$0xff] %vm78, %v1645
    %v1648 = vld [vmem:[#allocation5 + $0x320] sm:$0x1]
    %v1649 = vperm.slane %v1648, 0
    %v1650 = vadd.f32 %v1649, 0.0
    %v1651 = vld [vmem:[#allocation2] ss:$8 sm:$0x3]
    %v1652 = vld [vmem:[#allocation5 + $0x220] sm:$0xff]
    %v1653 = vld [vmem:[#allocation5 + $0x228] sm:$0xff]
    %v1654 = vld [vmem:[#allocation5 + $0x230] sm:$0xff]
    %v1655 = vld [vmem:[#allocation5 + $0x238] sm:$0xff]
    %v1657 = vsel %vm78, %v1651, 0
    %1659 = vmatpush.msra.mxu0 0.0
    %1660 = vmatpush.msra.mxu0 0.0
    %1661 = vmatpush.msra.mxu0 0.0
    %1662 = vmatpush.msra.mxu0 0.0
    %1663 = vmatpush.msra.mxu0 0.0
    %1664 = vmatpush.msra.mxu0 0.0
    %1665 = vmatpush.msra.mxu0 0.0
    %1666 = vmatpush.msra.mxu0 0.0
    %1667 = vmatpush.msra.mxu0 0.0
    %1668 = vmatpush.msra.mxu0 0.0
    %1669 = vmatpush.msra.mxu0 0.0
    %1670 = vmatpush.msra.mxu0 0.0
    %1671 = vmatpush.msra.mxu0 %v1655
    %1672 = vmatpush.msra.mxu0 %v1654
    %1673 = vmatpush.msra.mxu0 %v1653
    %1674 = vmatpush.msra.mxu0 %v1652
    %1675 = vmatmul.f32.gmra.mxu0 %v1657
    %v1676 = vpop.f32.mrf.mxu0
    %v1677 = vadd.f32 0.0, %v1676
    %1678 = vdwg.mxu0
    %v1679 = vadd.f32 %v1650, %v1677
    %s1680 = scalar_lea.vmem [#allocation2], 1
    %v1681 = vld [vmem:[%s1680] ss:$8 sm:$0x3]
    %v1682 = vld [vmem:[#allocation5 + $0x240] sm:$0xff]
    %v1683 = vld [vmem:[#allocation5 + $0x248] sm:$0xff]
    %v1684 = vld [vmem:[#allocation5 + $0x250] sm:$0xff]
    %v1685 = vld [vmem:[#allocation5 + $0x258] sm:$0xff]
    %v1687 = vsel %vm78, %v1681, 0
    %1689 = vmatpush.msra.mxu0 0.0
    %1690 = vmatpush.msra.mxu0 0.0
    %1691 = vmatpush.msra.mxu0 0.0
    %1692 = vmatpush.msra.mxu0 0.0
    %1693 = vmatpush.msra.mxu0 0.0
    %1694 = vmatpush.msra.mxu0 0.0
    %1695 = vmatpush.msra.mxu0 0.0
    %1696 = vmatpush.msra.mxu0 0.0
    %1697 = vmatpush.msra.mxu0 0.0
    %1698 = vmatpush.msra.mxu0 0.0
    %1699 = vmatpush.msra.mxu0 0.0
    %1700 = vmatpush.msra.mxu0 0.0
    %1701 = vmatpush.msra.mxu0 %v1685
    %1702 = vmatpush.msra.mxu0 %v1684
    %1703 = vmatpush.msra.mxu0 %v1683
    %1704 = vmatpush.msra.mxu0 %v1682
    %1705 = vmatmul.f32.gmra.mxu0 %v1687
    %v1706 = vpop.f32.mrf.mxu0
    %v1707 = vadd.f32 0.0, %v1706
    %1708 = vdwg.mxu0
    %v1709 = vadd.f32 %v1679, %v1707
    %s1710 = scalar_lea.vmem [#allocation2], 2
    %v1711 = vld [vmem:[%s1710] ss:$8 sm:$0x3]
    %v1712 = vld [vmem:[#allocation5 + $0x260] sm:$0xff]
    %v1713 = vld [vmem:[#allocation5 + $0x268] sm:$0xff]
    %v1714 = vld [vmem:[#allocation5 + $0x270] sm:$0xff]
    %v1715 = vld [vmem:[#allocation5 + $0x278] sm:$0xff]
    %v1717 = vsel %vm78, %v1711, 0
    %1719 = vmatpush.msra.mxu0 0.0
    %1720 = vmatpush.msra.mxu0 0.0
    %1721 = vmatpush.msra.mxu0 0.0
    %1722 = vmatpush.msra.mxu0 0.0
    %1723 = vmatpush.msra.mxu0 0.0
    %1724 = vmatpush.msra.mxu0 0.0
    %1725 = vmatpush.msra.mxu0 0.0
    %1726 = vmatpush.msra.mxu0 0.0
    %1727 = vmatpush.msra.mxu0 0.0
    %1728 = vmatpush.msra.mxu0 0.0
    %1729 = vmatpush.msra.mxu0 0.0
    %1730 = vmatpush.msra.mxu0 0.0
    %1731 = vmatpush.msra.mxu0 %v1715
    %1732 = vmatpush.msra.mxu0 %v1714
    %1733 = vmatpush.msra.mxu0 %v1713
    %1734 = vmatpush.msra.mxu0 %v1712
    %1735 = vmatmul.f32.gmra.mxu0 %v1717
    %v1736 = vpop.f32.mrf.mxu0
    %v1737 = vadd.f32 0.0, %v1736
    %1738 = vdwg.mxu0
    %v1739 = vadd.f32 %v1709, %v1737
    %s1740 = scalar_lea.vmem [#allocation2], 3
    %v1741 = vld [vmem:[%s1740] ss:$8 sm:$0x3]
    %v1742 = vld [vmem:[#allocation5 + $0x280] sm:$0xff]
    %v1743 = vld [vmem:[#allocation5 + $0x288] sm:$0xff]
    %v1744 = vld [vmem:[#allocation5 + $0x290] sm:$0xff]
    %v1745 = vld [vmem:[#allocation5 + $0x298] sm:$0xff]
    %v1747 = vsel %vm78, %v1741, 0
    %1749 = vmatpush.msra.mxu0 0.0
    %1750 = vmatpush.msra.mxu0 0.0
    %1751 = vmatpush.msra.mxu0 0.0
    %1752 = vmatpush.msra.mxu0 0.0
    %1753 = vmatpush.msra.mxu0 0.0
    %1754 = vmatpush.msra.mxu0 0.0
    %1755 = vmatpush.msra.mxu0 0.0
    %1756 = vmatpush.msra.mxu0 0.0
    %1757 = vmatpush.msra.mxu0 0.0
    %1758 = vmatpush.msra.mxu0 0.0
    %1759 = vmatpush.msra.mxu0 0.0
    %1760 = vmatpush.msra.mxu0 0.0
    %1761 = vmatpush.msra.mxu0 %v1745
    %1762 = vmatpush.msra.mxu0 %v1744
    %1763 = vmatpush.msra.mxu0 %v1743
    %1764 = vmatpush.msra.mxu0 %v1742
    %1765 = vmatmul.f32.gmra.mxu0 %v1747
    %v1766 = vpop.f32.mrf.mxu0
    %v1767 = vadd.f32 0.0, %v1766
    %1768 = vdwg.mxu0
    %v1769 = vadd.f32 %v1739, %v1767
    %s1770 = scalar_lea.vmem [#allocation2], 4
    %v1771 = vld [vmem:[%s1770] ss:$8 sm:$0x3]
    %v1772 = vld [vmem:[#allocation5 + $0x2a0] sm:$0xff]
    %v1773 = vld [vmem:[#allocation5 + $0x2a8] sm:$0xff]
    %v1774 = vld [vmem:[#allocation5 + $0x2b0] sm:$0xff]
    %v1775 = vld [vmem:[#allocation5 + $0x2b8] sm:$0xff]
    %v1777 = vsel %vm78, %v1771, 0
    %1779 = vmatpush.msra.mxu0 0.0
    %1780 = vmatpush.msra.mxu0 0.0
    %1781 = vmatpush.msra.mxu0 0.0
    %1782 = vmatpush.msra.mxu0 0.0
    %1783 = vmatpush.msra.mxu0 0.0
    %1784 = vmatpush.msra.mxu0 0.0
    %1785 = vmatpush.msra.mxu0 0.0
    %1786 = vmatpush.msra.mxu0 0.0
    %1787 = vmatpush.msra.mxu0 0.0
    %1788 = vmatpush.msra.mxu0 0.0
    %1789 = vmatpush.msra.mxu0 0.0
    %1790 = vmatpush.msra.mxu0 0.0
    %1791 = vmatpush.msra.mxu0 %v1775
    %1792 = vmatpush.msra.mxu0 %v1774
    %1793 = vmatpush.msra.mxu0 %v1773
    %1794 = vmatpush.msra.mxu0 %v1772
    %1795 = vmatmul.f32.gmra.mxu0 %v1777
    %v1796 = vpop.f32.mrf.mxu0
    %v1797 = vadd.f32 0.0, %v1796
    %1798 = vdwg.mxu0
    %v1799 = vadd.f32 %v1769, %v1797
    %s1800 = scalar_lea.vmem [#allocation2], 5
    %v1801 = vld [vmem:[%s1800] ss:$8 sm:$0x3]
    %v1802 = vld [vmem:[#allocation5 + $0x2c0] sm:$0xff]
    %v1803 = vld [vmem:[#allocation5 + $0x2c8] sm:$0xff]
    %v1804 = vld [vmem:[#allocation5 + $0x2d0] sm:$0xff]
    %v1805 = vld [vmem:[#allocation5 + $0x2d8] sm:$0xff]
    %v1807 = vsel %vm78, %v1801, 0
    %1809 = vmatpush.msra.mxu0 0.0
    %1810 = vmatpush.msra.mxu0 0.0
    %1811 = vmatpush.msra.mxu0 0.0
    %1812 = vmatpush.msra.mxu0 0.0
    %1813 = vmatpush.msra.mxu0 0.0
    %1814 = vmatpush.msra.mxu0 0.0
    %1815 = vmatpush.msra.mxu0 0.0
    %1816 = vmatpush.msra.mxu0 0.0
    %1817 = vmatpush.msra.mxu0 0.0
    %1818 = vmatpush.msra.mxu0 0.0
    %1819 = vmatpush.msra.mxu0 0.0
    %1820 = vmatpush.msra.mxu0 0.0
    %1821 = vmatpush.msra.mxu0 %v1805
    %1822 = vmatpush.msra.mxu0 %v1804
    %1823 = vmatpush.msra.mxu0 %v1803
    %1824 = vmatpush.msra.mxu0 %v1802
    %1825 = vmatmul.f32.gmra.mxu0 %v1807
    %v1826 = vpop.f32.mrf.mxu0
    %v1827 = vadd.f32 0.0, %v1826
    %1828 = vdwg.mxu0
    %v1829 = vadd.f32 %v1799, %v1827
    %s1830 = scalar_lea.vmem [#allocation2], 6
    %v1831 = vld [vmem:[%s1830] ss:$8 sm:$0x3]
    %v1832 = vld [vmem:[#allocation5 + $0x2e0] sm:$0xff]
    %v1833 = vld [vmem:[#allocation5 + $0x2e8] sm:$0xff]
    %v1834 = vld [vmem:[#allocation5 + $0x2f0] sm:$0xff]
    %v1835 = vld [vmem:[#allocation5 + $0x2f8] sm:$0xff]
    %v1837 = vsel %vm78, %v1831, 0
    %1839 = vmatpush.msra.mxu0 0.0
    %1840 = vmatpush.msra.mxu0 0.0
    %1841 = vmatpush.msra.mxu0 0.0
    %1842 = vmatpush.msra.mxu0 0.0
    %1843 = vmatpush.msra.mxu0 0.0
    %1844 = vmatpush.msra.mxu0 0.0
    %1845 = vmatpush.msra.mxu0 0.0
    %1846 = vmatpush.msra.mxu0 0.0
    %1847 = vmatpush.msra.mxu0 0.0
    %1848 = vmatpush.msra.mxu0 0.0
    %1849 = vmatpush.msra.mxu0 0.0
    %1850 = vmatpush.msra.mxu0 0.0
    %1851 = vmatpush.msra.mxu0 %v1835
    %1852 = vmatpush.msra.mxu0 %v1834
    %1853 = vmatpush.msra.mxu0 %v1833
    %1854 = vmatpush.msra.mxu0 %v1832
    %1855 = vmatmul.f32.gmra.mxu0 %v1837
    %v1856 = vpop.f32.mrf.mxu0
    %v1857 = vadd.f32 0.0, %v1856
    %1858 = vdwg.mxu0
    %v1859 = vadd.f32 %v1829, %v1857
    %s1860 = scalar_lea.vmem [#allocation2], 7
    %v1861 = vld [vmem:[%s1860] ss:$8 sm:$0x3]
    %v1862 = vld [vmem:[#allocation5 + $0x300] sm:$0xff]
    %v1863 = vld [vmem:[#allocation5 + $0x308] sm:$0xff]
    %v1864 = vld [vmem:[#allocation5 + $0x310] sm:$0xff]
    %v1865 = vld [vmem:[#allocation5 + $0x318] sm:$0xff]
    %v1867 = vsel %vm78, %v1861, 0
    %1869 = vmatpush.msra.mxu0 0.0
    %1870 = vmatpush.msra.mxu0 0.0
    %1871 = vmatpush.msra.mxu0 0.0
    %1872 = vmatpush.msra.mxu0 0.0
    %1873 = vmatpush.msra.mxu0 0.0
    %1874 = vmatpush.msra.mxu0 0.0
    %1875 = vmatpush.msra.mxu0 0.0
    %1876 = vmatpush.msra.mxu0 0.0
    %1877 = vmatpush.msra.mxu0 0.0
    %1878 = vmatpush.msra.mxu0 0.0
    %1879 = vmatpush.msra.mxu0 0.0
    %1880 = vmatpush.msra.mxu0 0.0
    %1881 = vmatpush.msra.mxu0 %v1865
    %1882 = vmatpush.msra.mxu0 %v1864
    %1883 = vmatpush.msra.mxu0 %v1863
    %1884 = vmatpush.msra.mxu0 %v1862
    %1885 = vmatmul.f32.gmra.mxu0 %v1867
    %v1886 = vpop.f32.mrf.mxu0
    %v1887 = vadd.f32 0.0, %v1886
    %1888 = vdwg.mxu0
    %v1889 = vadd.f32 %v1859, %v1887
    %1890 = vst [vmem:[%s2] sm:$0x3] %v1889
    // Predicated region
    $region18: #{transformer_flow_forward.1} parent=1 // pred_check
      _
    $region19: #{transformer_flow_forward.1} parent=1 // pred_check_branch
      %1892 = sbr.rel (0) target = $region21
    $region20: #{transformer_flow_forward.1} parent=1 // pred_region
      _
    $region21: #{transformer_flow_forward.1} parent=1 // pred_fallthru
      _
    // Predicated region
    $region22: #{transformer_flow_forward.1} parent=1 // pred_check
      _
    $region23: #{transformer_flow_forward.1} parent=1 // pred_check_branch
      %1894 = sbr.rel (0) target = $region25
    $region24: #{transformer_flow_forward.1} parent=1 // pred_region
      _
    $region25: #{transformer_flow_forward.1} parent=1 // pred_fallthru
      _
    %1895 = vsyncpa [#allocation4], 1
    %1896 = vsyncpa [#allocation6], 1

</llo_original>
